<compile_context>
chip_gen: v7x
topology: tpu7x:2x2x1
jax: 0.10.0
libtpu: 0.0.40
codegen_flags: <defaults>
</compile_context>

<pallas_src>
import functools

import jax
import jax.numpy as jnp
from jax.experimental import pallas as pl
from jax.experimental.pallas import tpu as pltpu


def _round_up(x, m):
    return ((x + m - 1) // m) * m


# ----------------------------------------------------------------------------
# Fused kernel: conv-as-matmul + BN batch statistics + normalize (+ relu)
# ----------------------------------------------------------------------------
def _fused_conv_bn_kernel(a_ref, w_ref, gamma_ref, beta_ref, o_ref,
                          y_ref, sum_ref,
                          *, tm, m_real, pad_rows, eps, relu, single_tile):
    j = pl.program_id(0)
    nt = pl.num_programs(0)

    @pl.when(j == 0)
    def _init():
        sum_ref[...] = jnp.zeros_like(sum_ref)

    # bf16 operands, f32 accumulation on the MXU.  No conv bias: a constant
    # per-channel shift cancels exactly under training-mode BatchNorm.
    y = jnp.dot(a_ref[...], w_ref[...], preferred_element_type=jnp.float32)

    if single_tile:
        y_ref[...] = y
    else:
        y_ref[pl.ds(j * tm, tm), :] = y

    # Zero-padded patch rows (if any) yield y == 0 and therefore contribute
    # exactly zero to the per-channel sums -> no masking needed.
    sum_ref[...] += jnp.sum(y, axis=0, keepdims=True)

    @pl.when(j == nt - 1)
    def _finalize():
        inv_m = 1.0 / m_real
        mean = sum_ref[...] * inv_m                    # (1, N)
        yv = y_ref[...]                                # (Mp, N) f32, resident
        diff = yv - mean
        # Two-pass variance; padded rows hold y == 0 (diff == -mean), so their
        # exactly-known contribution is subtracted analytically.
        sq = jnp.sum(diff * diff, axis=0, keepdims=True)
        var = jnp.maximum((sq - pad_rows * (mean * mean)) * inv_m, 0.0)
        inv_std = jax.lax.rsqrt(var + eps)
        scale = gamma_ref[...] * inv_std
        shift = beta_ref[...] - mean * scale
        out = yv * scale + shift
        if relu:
            out = jnp.maximum(out, 0.0)
        o_ref[...] = out.astype(o_ref.dtype)


def pallas_conv_bn(a_bf16, w_bf16, gamma, beta, *, eps=1e-5, relu=True,
                   out_dtype=jnp.bfloat16):
    """out = BN_train(a @ w) (+relu).

    a: (M, K) bf16 im2col patches, w: (K, N) bf16 conv weights.
    BatchNorm uses training-mode batch statistics over the M rows.
    Returns (M, N) activations in `out_dtype`.
    """
    M, K = a_bf16.shape
    _, N = w_bf16.shape

    if M <= 512:
        tm, Mp, a_p = M, M, a_bf16          # single tile: no row padding at all
    else:
        tm = 512
        Mp = _round_up(M, tm)
        a_p = jnp.pad(a_bf16, ((0, Mp - M), (0, 0)))
    nt = Mp // tm

    # Explicit scoped-VMEM budget (v5e default is only 16 MiB); cap for v7x.
    out_itemsize = jnp.dtype(out_dtype).itemsize
    est_vmem = (2 * tm * K * 2            # double-buffered LHS tiles (bf16)
                + 2 * K * N * 2           # resident weight block (bf16)
                + 4 * N * 4               # gamma / beta
                + 2 * Mp * N * out_itemsize   # resident output block
                + Mp * N * 4 + N * 4)     # y scratch + stats scratch
    vmem_limit = int(min(max(2 * est_vmem, 32 << 20), 64 << 20))

    kernel = functools.partial(
        _fused_conv_bn_kernel, tm=tm, m_real=float(M),
        pad_rows=float(Mp - M), eps=eps, relu=relu, single_tile=(nt == 1))

    out = pl.pallas_call(
        kernel,
        out_shape=jax.ShapeDtypeStruct((Mp, N), out_dtype),
        grid=(nt,),
        in_specs=[
            pl.BlockSpec((tm, K), lambda j: (j, 0)),   # streamed LHS tiles
            pl.BlockSpec((K, N), lambda j: (0, 0)),    # resident weight
            pl.BlockSpec((1, N), lambda j: (0, 0)),    # gamma
            pl.BlockSpec((1, N), lambda j: (0, 0)),    # beta
        ],
        # Resident output block (constant index) -> flushed to HBM exactly once.
        out_specs=pl.BlockSpec((Mp, N), lambda j: (0, 0)),
        scratch_shapes=[
            pltpu.VMEM((Mp, N), jnp.float32),   # pre-norm conv result
            pltpu.VMEM((1, N), jnp.float32),    # per-channel running sum
        ],
        compiler_params=pltpu.CompilerParams(
            dimension_semantics=("arbitrary",),  # stats accumulate over M tiles
            vmem_limit_bytes=vmem_limit),
    )(a_p, w_bf16,
      gamma.astype(jnp.float32).reshape(1, N),
      beta.astype(jnp.float32).reshape(1, N))
    return out[:M]


# ----------------------------------------------------------------------------
# Conv lowering glue (plain JAX: layout / patch extraction only)
# ----------------------------------------------------------------------------
def _im2col_bf16(x, k, stride, pad):
    """x: (N,H,W,C) NHWC (f32 or bf16) -> bf16 patches (N*Ho*Wo, k*k*C),
    column order (di, dj, c)."""
    x = jnp.pad(x, ((0, 0), (pad, pad), (pad, pad), (0, 0)))
    N, H, W, C = x.shape
    Ho = (H - k) // stride + 1
    Wo = (W - k) // stride + 1
    cols = []
    for di in range(k):
        for dj in range(k):
            cols.append(x[:, di:di + stride * Ho:stride,
                          dj:dj + stride * Wo:stride, :])
    patches = jnp.stack(cols, axis=3)                  # (N, Ho, Wo, k*k, C)
    patches = patches.reshape(N * Ho * Wo, k * k * C).astype(jnp.bfloat16)
    return patches, (N, Ho, Wo)


def conv_bn(x_nhwc, w, gamma, beta, *, stride, pad, relu,
            out_dtype=jnp.bfloat16):
    """Conv2d (PyTorch (Cout,Cin,kH,kW) weights) + training-mode BN + optional relu.

    The conv bias is intentionally not applied: under training-mode BatchNorm a
    constant per-channel shift cancels exactly, so dropping it is a no-op.
    """
    cout, cin, k, _ = w.shape
    patches, (N, Ho, Wo) = _im2col_bf16(x_nhwc, k, stride, pad)
    # weight rows ordered (di, dj, cin) to match _im2col; bf16 MXU operand.
    wmat = jnp.transpose(w, (2, 3, 1, 0)).reshape(k * k * cin, cout)
    wmat = wmat.astype(jnp.bfloat16)
    out = pallas_conv_bn(patches, wmat, gamma, beta, relu=relu,
                         out_dtype=out_dtype)
    return out.reshape(N, Ho, Wo, cout)


# ----------------------------------------------------------------------------
# encoder parameters & forward
# ----------------------------------------------------------------------------
def init_encoder_params(key, in_channels, num_hiddens):
    c1 = num_hiddens // 8
    c2 = num_hiddens // 4
    c3 = num_hiddens // 2
    c4 = num_hiddens
    c5 = 64
    ks = jax.random.split(key, 10)
    scale = 0.1

    def nrm(k, shape):
        return scale * jax.random.normal(k, shape, jnp.float32)

    # conv*_b kept only for parameter parity with the PyTorch module; they are
    # not used in the forward (training-mode BN cancels a per-channel bias).
    return {
        "conv1_w": nrm(ks[0], (c1, in_channels, 4, 4)), "conv1_b": nrm(ks[1], (c1,)),
        "bn1_gamma": jnp.ones((c1,), jnp.float32), "bn1_beta": jnp.zeros((c1,), jnp.float32),
        "conv2_w": nrm(ks[2], (c2, c1, 4, 4)), "conv2_b": nrm(ks[3], (c2,)),
        "bn2_gamma": jnp.ones((c2,), jnp.float32), "bn2_beta": jnp.zeros((c2,), jnp.float32),
        "conv3_w": nrm(ks[4], (c3, c2, 3, 3)), "conv3_b": nrm(ks[5], (c3,)),
        "bn3_gamma": jnp.ones((c3,), jnp.float32), "bn3_beta": jnp.zeros((c3,), jnp.float32),
        "conv4_w": nrm(ks[6], (c4, c3, 2, 2)), "conv4_b": nrm(ks[7], (c4,)),
        "bn4_gamma": jnp.ones((c4,), jnp.float32), "bn4_beta": jnp.zeros((c4,), jnp.float32),
        "conv5_w": nrm(ks[8], (c5, c4, 2, 2)), "conv5_b": nrm(ks[9], (c5,)),
        "bn5_gamma": jnp.ones((c5,), jnp.float32), "bn5_beta": jnp.zeros((c5,), jnp.float32),
    }


def encoder_forward(params, x_nchw):
    # accept NCHW (PyTorch convention), compute in NHWC, return NCHW.
    x = jnp.transpose(x_nchw, (0, 2, 3, 1)).astype(jnp.float32)

    # layers 1-4 keep bf16 intermediates (next layer re-quantizes anyway).
    x = conv_bn(x, params["conv1_w"], params["bn1_gamma"], params["bn1_beta"],
                stride=2, pad=1, relu=True, out_dtype=jnp.bfloat16)
    x = conv_bn(x, params["conv2_w"], params["bn2_gamma"], params["bn2_beta"],
                stride=2, pad=1, relu=True, out_dtype=jnp.bfloat16)
    x = conv_bn(x, params["conv3_w"], params["bn3_gamma"], params["bn3_beta"],
                stride=1, pad=1, relu=True, out_dtype=jnp.bfloat16)
    x = conv_bn(x, params["conv4_w"], params["bn4_gamma"], params["bn4_beta"],
                stride=1, pad=1, relu=True, out_dtype=jnp.bfloat16)
    # final block: conv5 -> bn5, NO relu (matches the PyTorch forward); f32 out.
    x = conv_bn(x, params["conv5_w"], params["bn5_gamma"], params["bn5_beta"],
                stride=1, pad=1, relu=False, out_dtype=jnp.float32)

    return jnp.transpose(x, (0, 3, 1, 2))  # back to NCHW


if __name__ == "__main__":
    key = jax.random.PRNGKey(0)
    k_x, k_p = jax.random.split(key)

    # Small shapes consistent with the module: batch=2, in_channels=4,
    # spatial=16, num_hiddens=32 (the constructor parameter).
    batch, in_channels, spatial, num_hiddens = 2, 4, 16, 32
    x = jax.random.normal(k_x, (batch, in_channels, spatial, spatial), jnp.float32)
    params = init_encoder_params(k_p, in_channels, num_hiddens)

    out = jax.jit(encoder_forward)(params, x)
    out = jax.block_until_ready(out)

    # Spatial: 16 -c1(s2)-> 8 -c2(s2)-> 4 -c3(k3,p1)-> 4 -c4(k2,p1)-> 5 -c5-> 6
    assert out.shape == (batch, 64, 6, 6), out.shape
    assert bool(jnp.all(jnp.isfinite(out)))
    print("KERNEL_OK")
</pallas_src>

<mosaic_0001>
module attributes {stable_mosaic.version = 11 : i64} {
  func.func @_fused_conv_bn_kernel(%arg0: i32, %arg1: memref<128x64xbf16, #tpu.memory_space<vmem>>, %arg2: memref<64x4xbf16, #tpu.memory_space<vmem>>, %arg3: memref<1x4xf32, #tpu.memory_space<vmem>>, %arg4: memref<1x4xf32, #tpu.memory_space<vmem>>, %arg5: memref<128x4xbf16, #tpu.memory_space<vmem>>, %arg6: memref<128x4xf32, #tpu.memory_space<vmem>>, %arg7: memref<1x4xf32, #tpu.memory_space<vmem>>) attributes {dimension_semantics = [#tpu.dimension_semantics<arbitrary>], iteration_bounds = array<i64: 1>, scalar_prefetch = 0 : i64, scratch_operands = 2 : i64, tpu.core_type = #tpu.core_type<tc>, window_params = [{transform_indices = @transform_0, window_bounds = array<i64: 128, 64>}, {pipeline_mode = #tpu.pipeline_mode<synchronous>, transform_indices = @transform_1, window_bounds = array<i64: 64, 4>}, {pipeline_mode = #tpu.pipeline_mode<synchronous>, transform_indices = @transform_2, window_bounds = array<i64: 1, 4>}, {pipeline_mode = #tpu.pipeline_mode<synchronous>, transform_indices = @transform_3, window_bounds = array<i64: 1, 4>}, {pipeline_mode = #tpu.pipeline_mode<synchronous>, transform_indices = @transform_4, window_bounds = array<i64: 128, 4>}]} {
    %c0_i32 = arith.constant 0 : i32
    %0 = arith.cmpi eq, %arg0, %c0_i32 : i32
    %1 = arith.extui %0 : i1 to i32
    %c0_i32_0 = arith.constant 0 : i32
    %2 = arith.cmpi ne, %1, %c0_i32_0 : i32
    scf.if %2 {
      %cst_13 = arith.constant 0.000000e+00 : f32
      %15 = vector.broadcast %cst_13 : f32 to vector<1x4xf32>
      %c0_14 = arith.constant 0 : index
      %c0_15 = arith.constant 0 : index
      %16 = vector.load %arg7[%c0_14, %c0_15] : memref<1x4xf32, #tpu.memory_space<vmem>>, vector<1x4xf32>
      tpu.vector_store %arg7[%c0_14, %c0_15], %15 {strides = array<i32>} : memref<1x4xf32, #tpu.memory_space<vmem>>, vector<1x4xf32>,
    } else {
    }
    %c0 = arith.constant 0 : index
    %c0_1 = arith.constant 0 : index
    %3 = vector.load %arg1[%c0, %c0_1] : memref<128x64xbf16, #tpu.memory_space<vmem>>, vector<128x64xbf16>
    %c0_2 = arith.constant 0 : index
    %c0_3 = arith.constant 0 : index
    %4 = vector.load %arg2[%c0_2, %c0_3] : memref<64x4xbf16, #tpu.memory_space<vmem>>, vector<64x4xbf16>
    %cst = arith.constant dense<0.000000e+00> : vector<128x4xf32>
    %5 = tpu.matmul %3, %4, %cst {dimension_numbers = #tpu.dot_dimension_numbers<[1], [0], [0], [1], [0, 0, 1, 1], [], []>} : vector<128x64xbf16>, vector<64x4xbf16>, vector<128x4xf32> -> vector<128x4xf32>
    %c0_4 = arith.constant 0 : index
    %c0_5 = arith.constant 0 : index
    %6 = vector.load %arg6[%c0_4, %c0_5] : memref<128x4xf32, #tpu.memory_space<vmem>>, vector<128x4xf32>
    tpu.vector_store %arg6[%c0_4, %c0_5], %5 {strides = array<i32>} : memref<128x4xf32, #tpu.memory_space<vmem>>, vector<128x4xf32>,
    %c0_6 = arith.constant 0 : index
    %c0_7 = arith.constant 0 : index
    %7 = vector.load %arg7[%c0_6, %c0_7] : memref<1x4xf32, #tpu.memory_space<vmem>>, vector<1x4xf32>
    %cst_8 = arith.constant dense<0.000000e+00> : vector<4xf32>
    %8 = vector.multi_reduction <add>, %5, %cst_8 [0] : vector<128x4xf32> to vector<4xf32>
    %9 = vector.shape_cast %8 : vector<4xf32> to vector<1x4xf32>
    %10 = arith.addf %7, %9 : vector<1x4xf32>
    %c0_9 = arith.constant 0 : index
    %c0_10 = arith.constant 0 : index
    %11 = vector.load %arg7[%c0_9, %c0_10] : memref<1x4xf32, #tpu.memory_space<vmem>>, vector<1x4xf32>
    tpu.vector_store %arg7[%c0_9, %c0_10], %10 {strides = array<i32>} : memref<1x4xf32, #tpu.memory_space<vmem>>, vector<1x4xf32>,
    %c0_i32_11 = arith.constant 0 : i32
    %12 = arith.cmpi eq, %arg0, %c0_i32_11 : i32
    %13 = arith.extui %12 : i1 to i32
    %c0_i32_12 = arith.constant 0 : i32
    %14 = arith.cmpi ne, %13, %c0_i32_12 : i32
    scf.if %14 {
      %c0_13 = arith.constant 0 : index
      %c0_14 = arith.constant 0 : index
      %15 = vector.load %arg7[%c0_13, %c0_14] : memref<1x4xf32, #tpu.memory_space<vmem>>, vector<1x4xf32>
      %cst_15 = arith.constant 7.812500e-03 : f32
      %16 = vector.broadcast %cst_15 : f32 to vector<1x4xf32>
      %17 = arith.mulf %15, %16 : vector<1x4xf32>
      %c0_16 = arith.constant 0 : index
      %c0_17 = arith.constant 0 : index
      %18 = vector.load %arg6[%c0_16, %c0_17] : memref<128x4xf32, #tpu.memory_space<vmem>>, vector<128x4xf32>
      %19 = vector.broadcast %17 : vector<1x4xf32> to vector<128x4xf32>
      %20 = arith.subf %18, %19 : vector<128x4xf32>
      %21 = arith.mulf %20, %20 : vector<128x4xf32>
      %cst_18 = arith.constant dense<0.000000e+00> : vector<4xf32>
      %22 = vector.multi_reduction <add>, %21, %cst_18 [0] : vector<128x4xf32> to vector<4xf32>
      %23 = vector.shape_cast %22 : vector<4xf32> to vector<1x4xf32>
      %24 = arith.mulf %17, %17 : vector<1x4xf32>
      %cst_19 = arith.constant 0.000000e+00 : f32
      %25 = vector.broadcast %cst_19 : f32 to vector<1x4xf32>
      %26 = arith.mulf %25, %24 : vector<1x4xf32>
      %27 = arith.subf %23, %26 : vector<1x4xf32>
      %cst_20 = arith.constant 7.812500e-03 : f32
      %28 = vector.broadcast %cst_20 : f32 to vector<1x4xf32>
      %29 = arith.mulf %27, %28 : vector<1x4xf32>
      %cst_21 = arith.constant 0.000000e+00 : f32
      %30 = vector.broadcast %cst_21 : f32 to vector<1x4xf32>
      %31 = arith.maximumf %29, %30 : vector<1x4xf32>
      %cst_22 = arith.constant 9.99999974E-6 : f32
      %32 = vector.broadcast %cst_22 : f32 to vector<1x4xf32>
      %33 = arith.addf %31, %32 : vector<1x4xf32>
      %34 = math.rsqrt %33 : vector<1x4xf32>
      %c0_23 = arith.constant 0 : index
      %c0_24 = arith.constant 0 : index
      %35 = vector.load %arg3[%c0_23, %c0_24] : memref<1x4xf32, #tpu.memory_space<vmem>>, vector<1x4xf32>
      %36 = arith.mulf %35, %34 : vector<1x4xf32>
      %c0_25 = arith.constant 0 : index
      %c0_26 = arith.constant 0 : index
      %37 = vector.load %arg4[%c0_25, %c0_26] : memref<1x4xf32, #tpu.memory_space<vmem>>, vector<1x4xf32>
      %38 = arith.mulf %17, %36 : vector<1x4xf32>
      %39 = arith.subf %37, %38 : vector<1x4xf32>
      %40 = vector.broadcast %36 : vector<1x4xf32> to vector<128x4xf32>
      %41 = arith.mulf %18, %40 : vector<128x4xf32>
      %42 = vector.broadcast %39 : vector<1x4xf32> to vector<128x4xf32>
      %43 = arith.addf %41, %42 : vector<128x4xf32>
      %cst_27 = arith.constant 0.000000e+00 : f32
      %44 = vector.broadcast %cst_27 : f32 to vector<128x4xf32>
      %45 = arith.maximumf %43, %44 : vector<128x4xf32>
      %46 = arith.truncf %45 : vector<128x4xf32> to vector<128x4xbf16>
      %c0_28 = arith.constant 0 : index
      %c0_29 = arith.constant 0 : index
      %47 = vector.load %arg5[%c0_28, %c0_29] : memref<128x4xbf16, #tpu.memory_space<vmem>>, vector<128x4xbf16>
      tpu.vector_store %arg5[%c0_28, %c0_29], %46 {strides = array<i32>} : memref<128x4xbf16, #tpu.memory_space<vmem>>, vector<128x4xbf16>,
    } else {
    }
    return
  }
  func.func @transform_0(%arg0: i32) -> (i32, i32) {
    %c0_i32 = arith.constant 0 : i32
    %c0_i32_0 = arith.constant 0 : i32
    return %arg0, %c0_i32 : i32, i32
  }
  func.func @transform_1(%arg0: i32) -> (i32, i32) {
    %c0_i32 = arith.constant 0 : i32
    %c0_i32_0 = arith.constant 0 : i32
    %c0_i32_1 = arith.constant 0 : i32
    return %c0_i32, %c0_i32_0 : i32, i32
  }
  func.func @transform_2(%arg0: i32) -> (i32, i32) {
    %c0_i32 = arith.constant 0 : i32
    %c0_i32_0 = arith.constant 0 : i32
    %c0_i32_1 = arith.constant 0 : i32
    return %c0_i32, %c0_i32_0 : i32, i32
  }
  func.func @transform_3(%arg0: i32) -> (i32, i32) {
    %c0_i32 = arith.constant 0 : i32
    %c0_i32_0 = arith.constant 0 : i32
    %c0_i32_1 = arith.constant 0 : i32
    return %c0_i32, %c0_i32_0 : i32, i32
  }
  func.func @transform_4(%arg0: i32) -> (i32, i32) {
    %c0_i32 = arith.constant 0 : i32
    %c0_i32_0 = arith.constant 0 : i32
    %c0_i32_1 = arith.constant 0 : i32
    return %c0_i32, %c0_i32_0 : i32, i32
  }
}

module attributes {stable_mosaic.version = 11 : i64} {
  func.func @_fused_conv_bn_kernel(%arg0: i32, %arg1: memref<32x64xbf16, #tpu.memory_space<vmem>>, %arg2: memref<64x8xbf16, #tpu.memory_space<vmem>>, %arg3: memref<1x8xf32, #tpu.memory_space<vmem>>, %arg4: memref<1x8xf32, #tpu.memory_space<vmem>>, %arg5: memref<32x8xbf16, #tpu.memory_space<vmem>>, %arg6: memref<32x8xf32, #tpu.memory_space<vmem>>, %arg7: memref<1x8xf32, #tpu.memory_space<vmem>>) attributes {dimension_semantics = [#tpu.dimension_semantics<arbitrary>], iteration_bounds = array<i64: 1>, scalar_prefetch = 0 : i64, scratch_operands = 2 : i64, tpu.core_type = #tpu.core_type<tc>, window_params = [{transform_indices = @transform_0, window_bounds = array<i64: 32, 64>}, {pipeline_mode = #tpu.pipeline_mode<synchronous>, transform_indices = @transform_1, window_bounds = array<i64: 64, 8>}, {pipeline_mode = #tpu.pipeline_mode<synchronous>, transform_indices = @transform_2, window_bounds = array<i64: 1, 8>}, {pipeline_mode = #tpu.pipeline_mode<synchronous>, transform_indices = @transform_3, window_bounds = array<i64: 1, 8>}, {pipeline_mode = #tpu.pipeline_mode<synchronous>, transform_indices = @transform_4, window_bounds = array<i64: 32, 8>}]} {
    %c0_i32 = arith.constant 0 : i32
    %0 = arith.cmpi eq, %arg0, %c0_i32 : i32
    %1 = arith.extui %0 : i1 to i32
    %c0_i32_0 = arith.constant 0 : i32
    %2 = arith.cmpi ne, %1, %c0_i32_0 : i32
    scf.if %2 {
      %cst_13 = arith.constant 0.000000e+00 : f32
      %15 = vector.broadcast %cst_13 : f32 to vector<1x8xf32>
      %c0_14 = arith.constant 0 : index
      %c0_15 = arith.constant 0 : index
      %16 = vector.load %arg7[%c0_14, %c0_15] : memref<1x8xf32, #tpu.memory_space<vmem>>, vector<1x8xf32>
      tpu.vector_store %arg7[%c0_14, %c0_15], %15 {strides = array<i32>} : memref<1x8xf32, #tpu.memory_space<vmem>>, vector<1x8xf32>,
    } else {
    }
    %c0 = arith.constant 0 : index
    %c0_1 = arith.constant 0 : index
    %3 = vector.load %arg1[%c0, %c0_1] : memref<32x64xbf16, #tpu.memory_space<vmem>>, vector<32x64xbf16>
    %c0_2 = arith.constant 0 : index
    %c0_3 = arith.constant 0 : index
    %4 = vector.load %arg2[%c0_2, %c0_3] : memref<64x8xbf16, #tpu.memory_space<vmem>>, vector<64x8xbf16>
    %cst = arith.constant dense<0.000000e+00> : vector<32x8xf32>
    %5 = tpu.matmul %3, %4, %cst {dimension_numbers = #tpu.dot_dimension_numbers<[1], [0], [0], [1], [0, 0, 1, 1], [], []>} : vector<32x64xbf16>, vector<64x8xbf16>, vector<32x8xf32> -> vector<32x8xf32>
    %c0_4 = arith.constant 0 : index
    %c0_5 = arith.constant 0 : index
    %6 = vector.load %arg6[%c0_4, %c0_5] : memref<32x8xf32, #tpu.memory_space<vmem>>, vector<32x8xf32>
    tpu.vector_store %arg6[%c0_4, %c0_5], %5 {strides = array<i32>} : memref<32x8xf32, #tpu.memory_space<vmem>>, vector<32x8xf32>,
    %c0_6 = arith.constant 0 : index
    %c0_7 = arith.constant 0 : index
    %7 = vector.load %arg7[%c0_6, %c0_7] : memref<1x8xf32, #tpu.memory_space<vmem>>, vector<1x8xf32>
    %cst_8 = arith.constant dense<0.000000e+00> : vector<8xf32>
    %8 = vector.multi_reduction <add>, %5, %cst_8 [0] : vector<32x8xf32> to vector<8xf32>
    %9 = vector.shape_cast %8 : vector<8xf32> to vector<1x8xf32>
    %10 = arith.addf %7, %9 : vector<1x8xf32>
    %c0_9 = arith.constant 0 : index
    %c0_10 = arith.constant 0 : index
    %11 = vector.load %arg7[%c0_9, %c0_10] : memref<1x8xf32, #tpu.memory_space<vmem>>, vector<1x8xf32>
    tpu.vector_store %arg7[%c0_9, %c0_10], %10 {strides = array<i32>} : memref<1x8xf32, #tpu.memory_space<vmem>>, vector<1x8xf32>,
    %c0_i32_11 = arith.constant 0 : i32
    %12 = arith.cmpi eq, %arg0, %c0_i32_11 : i32
    %13 = arith.extui %12 : i1 to i32
    %c0_i32_12 = arith.constant 0 : i32
    %14 = arith.cmpi ne, %13, %c0_i32_12 : i32
    scf.if %14 {
      %c0_13 = arith.constant 0 : index
      %c0_14 = arith.constant 0 : index
      %15 = vector.load %arg7[%c0_13, %c0_14] : memref<1x8xf32, #tpu.memory_space<vmem>>, vector<1x8xf32>
      %cst_15 = arith.constant 3.125000e-02 : f32
      %16 = vector.broadcast %cst_15 : f32 to vector<1x8xf32>
      %17 = arith.mulf %15, %16 : vector<1x8xf32>
      %c0_16 = arith.constant 0 : index
      %c0_17 = arith.constant 0 : index
      %18 = vector.load %arg6[%c0_16, %c0_17] : memref<32x8xf32, #tpu.memory_space<vmem>>, vector<32x8xf32>
      %19 = vector.broadcast %17 : vector<1x8xf32> to vector<32x8xf32>
      %20 = arith.subf %18, %19 : vector<32x8xf32>
      %21 = arith.mulf %20, %20 : vector<32x8xf32>
      %cst_18 = arith.constant dense<0.000000e+00> : vector<8xf32>
      %22 = vector.multi_reduction <add>, %21, %cst_18 [0] : vector<32x8xf32> to vector<8xf32>
      %23 = vector.shape_cast %22 : vector<8xf32> to vector<1x8xf32>
      %24 = arith.mulf %17, %17 : vector<1x8xf32>
      %cst_19 = arith.constant 0.000000e+00 : f32
      %25 = vector.broadcast %cst_19 : f32 to vector<1x8xf32>
      %26 = arith.mulf %25, %24 : vector<1x8xf32>
      %27 = arith.subf %23, %26 : vector<1x8xf32>
      %cst_20 = arith.constant 3.125000e-02 : f32
      %28 = vector.broadcast %cst_20 : f32 to vector<1x8xf32>
      %29 = arith.mulf %27, %28 : vector<1x8xf32>
      %cst_21 = arith.constant 0.000000e+00 : f32
      %30 = vector.broadcast %cst_21 : f32 to vector<1x8xf32>
      %31 = arith.maximumf %29, %30 : vector<1x8xf32>
      %cst_22 = arith.constant 9.99999974E-6 : f32
      %32 = vector.broadcast %cst_22 : f32 to vector<1x8xf32>
      %33 = arith.addf %31, %32 : vector<1x8xf32>
      %34 = math.rsqrt %33 : vector<1x8xf32>
      %c0_23 = arith.constant 0 : index
      %c0_24 = arith.constant 0 : index
      %35 = vector.load %arg3[%c0_23, %c0_24] : memref<1x8xf32, #tpu.memory_space<vmem>>, vector<1x8xf32>
      %36 = arith.mulf %35, %34 : vector<1x8xf32>
      %c0_25 = arith.constant 0 : index
      %c0_26 = arith.constant 0 : index
      %37 = vector.load %arg4[%c0_25, %c0_26] : memref<1x8xf32, #tpu.memory_space<vmem>>, vector<1x8xf32>
      %38 = arith.mulf %17, %36 : vector<1x8xf32>
      %39 = arith.subf %37, %38 : vector<1x8xf32>
      %40 = vector.broadcast %36 : vector<1x8xf32> to vector<32x8xf32>
      %41 = arith.mulf %18, %40 : vector<32x8xf32>
      %42 = vector.broadcast %39 : vector<1x8xf32> to vector<32x8xf32>
      %43 = arith.addf %41, %42 : vector<32x8xf32>
      %cst_27 = arith.constant 0.000000e+00 : f32
      %44 = vector.broadcast %cst_27 : f32 to vector<32x8xf32>
      %45 = arith.maximumf %43, %44 : vector<32x8xf32>
      %46 = arith.truncf %45 : vector<32x8xf32> to vector<32x8xbf16>
      %c0_28 = arith.constant 0 : index
      %c0_29 = arith.constant 0 : index
      %47 = vector.load %arg5[%c0_28, %c0_29] : memref<32x8xbf16, #tpu.memory_space<vmem>>, vector<32x8xbf16>
      tpu.vector_store %arg5[%c0_28, %c0_29], %46 {strides = array<i32>} : memref<32x8xbf16, #tpu.memory_space<vmem>>, vector<32x8xbf16>,
    } else {
    }
    return
  }
  func.func @transform_0(%arg0: i32) -> (i32, i32) {
    %c0_i32 = arith.constant 0 : i32
    %c0_i32_0 = arith.constant 0 : i32
    return %arg0, %c0_i32 : i32, i32
  }
  func.func @transform_1(%arg0: i32) -> (i32, i32) {
    %c0_i32 = arith.constant 0 : i32
    %c0_i32_0 = arith.constant 0 : i32
    %c0_i32_1 = arith.constant 0 : i32
    return %c0_i32, %c0_i32_0 : i32, i32
  }
  func.func @transform_2(%arg0: i32) -> (i32, i32) {
    %c0_i32 = arith.constant 0 : i32
    %c0_i32_0 = arith.constant 0 : i32
    %c0_i32_1 = arith.constant 0 : i32
    return %c0_i32, %c0_i32_0 : i32, i32
  }
  func.func @transform_3(%arg0: i32) -> (i32, i32) {
    %c0_i32 = arith.constant 0 : i32
    %c0_i32_0 = arith.constant 0 : i32
    %c0_i32_1 = arith.constant 0 : i32
    return %c0_i32, %c0_i32_0 : i32, i32
  }
  func.func @transform_4(%arg0: i32) -> (i32, i32) {
    %c0_i32 = arith.constant 0 : i32
    %c0_i32_0 = arith.constant 0 : i32
    %c0_i32_1 = arith.constant 0 : i32
    return %c0_i32, %c0_i32_0 : i32, i32
  }
}

module attributes {stable_mosaic.version = 11 : i64} {
  func.func @_fused_conv_bn_kernel(%arg0: i32, %arg1: memref<32x72xbf16, #tpu.memory_space<vmem>>, %arg2: memref<72x16xbf16, #tpu.memory_space<vmem>>, %arg3: memref<1x16xf32, #tpu.memory_space<vmem>>, %arg4: memref<1x16xf32, #tpu.memory_space<vmem>>, %arg5: memref<32x16xbf16, #tpu.memory_space<vmem>>, %arg6: memref<32x16xf32, #tpu.memory_space<vmem>>, %arg7: memref<1x16xf32, #tpu.memory_space<vmem>>) attributes {dimension_semantics = [#tpu.dimension_semantics<arbitrary>], iteration_bounds = array<i64: 1>, scalar_prefetch = 0 : i64, scratch_operands = 2 : i64, tpu.core_type = #tpu.core_type<tc>, window_params = [{transform_indices = @transform_0, window_bounds = array<i64: 32, 72>}, {pipeline_mode = #tpu.pipeline_mode<synchronous>, transform_indices = @transform_1, window_bounds = array<i64: 72, 16>}, {pipeline_mode = #tpu.pipeline_mode<synchronous>, transform_indices = @transform_2, window_bounds = array<i64: 1, 16>}, {pipeline_mode = #tpu.pipeline_mode<synchronous>, transform_indices = @transform_3, window_bounds = array<i64: 1, 16>}, {pipeline_mode = #tpu.pipeline_mode<synchronous>, transform_indices = @transform_4, window_bounds = array<i64: 32, 16>}]} {
    %c0_i32 = arith.constant 0 : i32
    %0 = arith.cmpi eq, %arg0, %c0_i32 : i32
    %1 = arith.extui %0 : i1 to i32
    %c0_i32_0 = arith.constant 0 : i32
    %2 = arith.cmpi ne, %1, %c0_i32_0 : i32
    scf.if %2 {
      %cst_13 = arith.constant 0.000000e+00 : f32
      %15 = vector.broadcast %cst_13 : f32 to vector<1x16xf32>
      %c0_14 = arith.constant 0 : index
      %c0_15 = arith.constant 0 : index
      %16 = vector.load %arg7[%c0_14, %c0_15] : memref<1x16xf32, #tpu.memory_space<vmem>>, vector<1x16xf32>
      tpu.vector_store %arg7[%c0_14, %c0_15], %15 {strides = array<i32>} : memref<1x16xf32, #tpu.memory_space<vmem>>, vector<1x16xf32>,
    } else {
    }
    %c0 = arith.constant 0 : index
    %c0_1 = arith.constant 0 : index
    %3 = vector.load %arg1[%c0, %c0_1] : memref<32x72xbf16, #tpu.memory_space<vmem>>, vector<32x72xbf16>
    %c0_2 = arith.constant 0 : index
    %c0_3 = arith.constant 0 : index
    %4 = vector.load %arg2[%c0_2, %c0_3] : memref<72x16xbf16, #tpu.memory_space<vmem>>, vector<72x16xbf16>
    %cst = arith.constant dense<0.000000e+00> : vector<32x16xf32>
    %5 = tpu.matmul %3, %4, %cst {dimension_numbers = #tpu.dot_dimension_numbers<[1], [0], [0], [1], [0, 0, 1, 1], [], []>} : vector<32x72xbf16>, vector<72x16xbf16>, vector<32x16xf32> -> vector<32x16xf32>
    %c0_4 = arith.constant 0 : index
    %c0_5 = arith.constant 0 : index
    %6 = vector.load %arg6[%c0_4, %c0_5] : memref<32x16xf32, #tpu.memory_space<vmem>>, vector<32x16xf32>
    tpu.vector_store %arg6[%c0_4, %c0_5], %5 {strides = array<i32>} : memref<32x16xf32, #tpu.memory_space<vmem>>, vector<32x16xf32>,
    %c0_6 = arith.constant 0 : index
    %c0_7 = arith.constant 0 : index
    %7 = vector.load %arg7[%c0_6, %c0_7] : memref<1x16xf32, #tpu.memory_space<vmem>>, vector<1x16xf32>
    %cst_8 = arith.constant dense<0.000000e+00> : vector<16xf32>
    %8 = vector.multi_reduction <add>, %5, %cst_8 [0] : vector<32x16xf32> to vector<16xf32>
    %9 = vector.shape_cast %8 : vector<16xf32> to vector<1x16xf32>
    %10 = arith.addf %7, %9 : vector<1x16xf32>
    %c0_9 = arith.constant 0 : index
    %c0_10 = arith.constant 0 : index
    %11 = vector.load %arg7[%c0_9, %c0_10] : memref<1x16xf32, #tpu.memory_space<vmem>>, vector<1x16xf32>
    tpu.vector_store %arg7[%c0_9, %c0_10], %10 {strides = array<i32>} : memref<1x16xf32, #tpu.memory_space<vmem>>, vector<1x16xf32>,
    %c0_i32_11 = arith.constant 0 : i32
    %12 = arith.cmpi eq, %arg0, %c0_i32_11 : i32
    %13 = arith.extui %12 : i1 to i32
    %c0_i32_12 = arith.constant 0 : i32
    %14 = arith.cmpi ne, %13, %c0_i32_12 : i32
    scf.if %14 {
      %c0_13 = arith.constant 0 : index
      %c0_14 = arith.constant 0 : index
      %15 = vector.load %arg7[%c0_13, %c0_14] : memref<1x16xf32, #tpu.memory_space<vmem>>, vector<1x16xf32>
      %cst_15 = arith.constant 3.125000e-02 : f32
      %16 = vector.broadcast %cst_15 : f32 to vector<1x16xf32>
      %17 = arith.mulf %15, %16 : vector<1x16xf32>
      %c0_16 = arith.constant 0 : index
      %c0_17 = arith.constant 0 : index
      %18 = vector.load %arg6[%c0_16, %c0_17] : memref<32x16xf32, #tpu.memory_space<vmem>>, vector<32x16xf32>
      %19 = vector.broadcast %17 : vector<1x16xf32> to vector<32x16xf32>
      %20 = arith.subf %18, %19 : vector<32x16xf32>
      %21 = arith.mulf %20, %20 : vector<32x16xf32>
      %cst_18 = arith.constant dense<0.000000e+00> : vector<16xf32>
      %22 = vector.multi_reduction <add>, %21, %cst_18 [0] : vector<32x16xf32> to vector<16xf32>
      %23 = vector.shape_cast %22 : vector<16xf32> to vector<1x16xf32>
      %24 = arith.mulf %17, %17 : vector<1x16xf32>
      %cst_19 = arith.constant 0.000000e+00 : f32
      %25 = vector.broadcast %cst_19 : f32 to vector<1x16xf32>
      %26 = arith.mulf %25, %24 : vector<1x16xf32>
      %27 = arith.subf %23, %26 : vector<1x16xf32>
      %cst_20 = arith.constant 3.125000e-02 : f32
      %28 = vector.broadcast %cst_20 : f32 to vector<1x16xf32>
      %29 = arith.mulf %27, %28 : vector<1x16xf32>
      %cst_21 = arith.constant 0.000000e+00 : f32
      %30 = vector.broadcast %cst_21 : f32 to vector<1x16xf32>
      %31 = arith.maximumf %29, %30 : vector<1x16xf32>
      %cst_22 = arith.constant 9.99999974E-6 : f32
      %32 = vector.broadcast %cst_22 : f32 to vector<1x16xf32>
      %33 = arith.addf %31, %32 : vector<1x16xf32>
      %34 = math.rsqrt %33 : vector<1x16xf32>
      %c0_23 = arith.constant 0 : index
      %c0_24 = arith.constant 0 : index
      %35 = vector.load %arg3[%c0_23, %c0_24] : memref<1x16xf32, #tpu.memory_space<vmem>>, vector<1x16xf32>
      %36 = arith.mulf %35, %34 : vector<1x16xf32>
      %c0_25 = arith.constant 0 : index
      %c0_26 = arith.constant 0 : index
      %37 = vector.load %arg4[%c0_25, %c0_26] : memref<1x16xf32, #tpu.memory_space<vmem>>, vector<1x16xf32>
      %38 = arith.mulf %17, %36 : vector<1x16xf32>
      %39 = arith.subf %37, %38 : vector<1x16xf32>
      %40 = vector.broadcast %36 : vector<1x16xf32> to vector<32x16xf32>
      %41 = arith.mulf %18, %40 : vector<32x16xf32>
      %42 = vector.broadcast %39 : vector<1x16xf32> to vector<32x16xf32>
      %43 = arith.addf %41, %42 : vector<32x16xf32>
      %cst_27 = arith.constant 0.000000e+00 : f32
      %44 = vector.broadcast %cst_27 : f32 to vector<32x16xf32>
      %45 = arith.maximumf %43, %44 : vector<32x16xf32>
      %46 = arith.truncf %45 : vector<32x16xf32> to vector<32x16xbf16>
      %c0_28 = arith.constant 0 : index
      %c0_29 = arith.constant 0 : index
      %47 = vector.load %arg5[%c0_28, %c0_29] : memref<32x16xbf16, #tpu.memory_space<vmem>>, vector<32x16xbf16>
      tpu.vector_store %arg5[%c0_28, %c0_29], %46 {strides = array<i32>} : memref<32x16xbf16, #tpu.memory_space<vmem>>, vector<32x16xbf16>,
    } else {
    }
    return
  }
  func.func @transform_0(%arg0: i32) -> (i32, i32) {
    %c0_i32 = arith.constant 0 : i32
    %c0_i32_0 = arith.constant 0 : i32
    return %arg0, %c0_i32 : i32, i32
  }
  func.func @transform_1(%arg0: i32) -> (i32, i32) {
    %c0_i32 = arith.constant 0 : i32
    %c0_i32_0 = arith.constant 0 : i32
    %c0_i32_1 = arith.constant 0 : i32
    return %c0_i32, %c0_i32_0 : i32, i32
  }
  func.func @transform_2(%arg0: i32) -> (i32, i32) {
    %c0_i32 = arith.constant 0 : i32
    %c0_i32_0 = arith.constant 0 : i32
    %c0_i32_1 = arith.constant 0 : i32
    return %c0_i32, %c0_i32_0 : i32, i32
  }
  func.func @transform_3(%arg0: i32) -> (i32, i32) {
    %c0_i32 = arith.constant 0 : i32
    %c0_i32_0 = arith.constant 0 : i32
    %c0_i32_1 = arith.constant 0 : i32
    return %c0_i32, %c0_i32_0 : i32, i32
  }
  func.func @transform_4(%arg0: i32) -> (i32, i32) {
    %c0_i32 = arith.constant 0 : i32
    %c0_i32_0 = arith.constant 0 : i32
    %c0_i32_1 = arith.constant 0 : i32
    return %c0_i32, %c0_i32_0 : i32, i32
  }
}

module attributes {stable_mosaic.version = 11 : i64} {
  func.func @_fused_conv_bn_kernel(%arg0: i32, %arg1: memref<50x64xbf16, #tpu.memory_space<vmem>>, %arg2: memref<64x32xbf16, #tpu.memory_space<vmem>>, %arg3: memref<1x32xf32, #tpu.memory_space<vmem>>, %arg4: memref<1x32xf32, #tpu.memory_space<vmem>>, %arg5: memref<50x32xbf16, #tpu.memory_space<vmem>>, %arg6: memref<50x32xf32, #tpu.memory_space<vmem>>, %arg7: memref<1x32xf32, #tpu.memory_space<vmem>>) attributes {dimension_semantics = [#tpu.dimension_semantics<arbitrary>], iteration_bounds = array<i64: 1>, scalar_prefetch = 0 : i64, scratch_operands = 2 : i64, tpu.core_type = #tpu.core_type<tc>, window_params = [{transform_indices = @transform_0, window_bounds = array<i64: 50, 64>}, {pipeline_mode = #tpu.pipeline_mode<synchronous>, transform_indices = @transform_1, window_bounds = array<i64: 64, 32>}, {pipeline_mode = #tpu.pipeline_mode<synchronous>, transform_indices = @transform_2, window_bounds = array<i64: 1, 32>}, {pipeline_mode = #tpu.pipeline_mode<synchronous>, transform_indices = @transform_3, window_bounds = array<i64: 1, 32>}, {pipeline_mode = #tpu.pipeline_mode<synchronous>, transform_indices = @transform_4, window_bounds = array<i64: 50, 32>}]} {
    %c0_i32 = arith.constant 0 : i32
    %0 = arith.cmpi eq, %arg0, %c0_i32 : i32
    %1 = arith.extui %0 : i1 to i32
    %c0_i32_0 = arith.constant 0 : i32
    %2 = arith.cmpi ne, %1, %c0_i32_0 : i32
    scf.if %2 {
      %cst_13 = arith.constant 0.000000e+00 : f32
      %15 = vector.broadcast %cst_13 : f32 to vector<1x32xf32>
      %c0_14 = arith.constant 0 : index
      %c0_15 = arith.constant 0 : index
      %16 = vector.load %arg7[%c0_14, %c0_15] : memref<1x32xf32, #tpu.memory_space<vmem>>, vector<1x32xf32>
      tpu.vector_store %arg7[%c0_14, %c0_15], %15 {strides = array<i32>} : memref<1x32xf32, #tpu.memory_space<vmem>>, vector<1x32xf32>,
    } else {
    }
    %c0 = arith.constant 0 : index
    %c0_1 = arith.constant 0 : index
    %3 = vector.load %arg1[%c0, %c0_1] : memref<50x64xbf16, #tpu.memory_space<vmem>>, vector<50x64xbf16>
    %c0_2 = arith.constant 0 : index
    %c0_3 = arith.constant 0 : index
    %4 = vector.load %arg2[%c0_2, %c0_3] : memref<64x32xbf16, #tpu.memory_space<vmem>>, vector<64x32xbf16>
    %cst = arith.constant dense<0.000000e+00> : vector<50x32xf32>
    %5 = tpu.matmul %3, %4, %cst {dimension_numbers = #tpu.dot_dimension_numbers<[1], [0], [0], [1], [0, 0, 1, 1], [], []>} : vector<50x64xbf16>, vector<64x32xbf16>, vector<50x32xf32> -> vector<50x32xf32>
    %c0_4 = arith.constant 0 : index
    %c0_5 = arith.constant 0 : index
    %6 = vector.load %arg6[%c0_4, %c0_5] : memref<50x32xf32, #tpu.memory_space<vmem>>, vector<50x32xf32>
    tpu.vector_store %arg6[%c0_4, %c0_5], %5 {strides = array<i32>} : memref<50x32xf32, #tpu.memory_space<vmem>>, vector<50x32xf32>,
    %c0_6 = arith.constant 0 : index
    %c0_7 = arith.constant 0 : index
    %7 = vector.load %arg7[%c0_6, %c0_7] : memref<1x32xf32, #tpu.memory_space<vmem>>, vector<1x32xf32>
    %cst_8 = arith.constant dense<0.000000e+00> : vector<32xf32>
    %8 = vector.multi_reduction <add>, %5, %cst_8 [0] : vector<50x32xf32> to vector<32xf32>
    %9 = vector.shape_cast %8 : vector<32xf32> to vector<1x32xf32>
    %10 = arith.addf %7, %9 : vector<1x32xf32>
    %c0_9 = arith.constant 0 : index
    %c0_10 = arith.constant 0 : index
    %11 = vector.load %arg7[%c0_9, %c0_10] : memref<1x32xf32, #tpu.memory_space<vmem>>, vector<1x32xf32>
    tpu.vector_store %arg7[%c0_9, %c0_10], %10 {strides = array<i32>} : memref<1x32xf32, #tpu.memory_space<vmem>>, vector<1x32xf32>,
    %c0_i32_11 = arith.constant 0 : i32
    %12 = arith.cmpi eq, %arg0, %c0_i32_11 : i32
    %13 = arith.extui %12 : i1 to i32
    %c0_i32_12 = arith.constant 0 : i32
    %14 = arith.cmpi ne, %13, %c0_i32_12 : i32
    scf.if %14 {
      %c0_13 = arith.constant 0 : index
      %c0_14 = arith.constant 0 : index
      %15 = vector.load %arg7[%c0_13, %c0_14] : memref<1x32xf32, #tpu.memory_space<vmem>>, vector<1x32xf32>
      %cst_15 = arith.constant 2.000000e-02 : f32
      %16 = vector.broadcast %cst_15 : f32 to vector<1x32xf32>
      %17 = arith.mulf %15, %16 : vector<1x32xf32>
      %c0_16 = arith.constant 0 : index
      %c0_17 = arith.constant 0 : index
      %18 = vector.load %arg6[%c0_16, %c0_17] : memref<50x32xf32, #tpu.memory_space<vmem>>, vector<50x32xf32>
      %19 = vector.broadcast %17 : vector<1x32xf32> to vector<50x32xf32>
      %20 = arith.subf %18, %19 : vector<50x32xf32>
      %21 = arith.mulf %20, %20 : vector<50x32xf32>
      %cst_18 = arith.constant dense<0.000000e+00> : vector<32xf32>
      %22 = vector.multi_reduction <add>, %21, %cst_18 [0] : vector<50x32xf32> to vector<32xf32>
      %23 = vector.shape_cast %22 : vector<32xf32> to vector<1x32xf32>
      %24 = arith.mulf %17, %17 : vector<1x32xf32>
      %cst_19 = arith.constant 0.000000e+00 : f32
      %25 = vector.broadcast %cst_19 : f32 to vector<1x32xf32>
      %26 = arith.mulf %25, %24 : vector<1x32xf32>
      %27 = arith.subf %23, %26 : vector<1x32xf32>
      %cst_20 = arith.constant 2.000000e-02 : f32
      %28 = vector.broadcast %cst_20 : f32 to vector<1x32xf32>
      %29 = arith.mulf %27, %28 : vector<1x32xf32>
      %cst_21 = arith.constant 0.000000e+00 : f32
      %30 = vector.broadcast %cst_21 : f32 to vector<1x32xf32>
      %31 = arith.maximumf %29, %30 : vector<1x32xf32>
      %cst_22 = arith.constant 9.99999974E-6 : f32
      %32 = vector.broadcast %cst_22 : f32 to vector<1x32xf32>
      %33 = arith.addf %31, %32 : vector<1x32xf32>
      %34 = math.rsqrt %33 : vector<1x32xf32>
      %c0_23 = arith.constant 0 : index
      %c0_24 = arith.constant 0 : index
      %35 = vector.load %arg3[%c0_23, %c0_24] : memref<1x32xf32, #tpu.memory_space<vmem>>, vector<1x32xf32>
      %36 = arith.mulf %35, %34 : vector<1x32xf32>
      %c0_25 = arith.constant 0 : index
      %c0_26 = arith.constant 0 : index
      %37 = vector.load %arg4[%c0_25, %c0_26] : memref<1x32xf32, #tpu.memory_space<vmem>>, vector<1x32xf32>
      %38 = arith.mulf %17, %36 : vector<1x32xf32>
      %39 = arith.subf %37, %38 : vector<1x32xf32>
      %40 = vector.broadcast %36 : vector<1x32xf32> to vector<50x32xf32>
      %41 = arith.mulf %18, %40 : vector<50x32xf32>
      %42 = vector.broadcast %39 : vector<1x32xf32> to vector<50x32xf32>
      %43 = arith.addf %41, %42 : vector<50x32xf32>
      %cst_27 = arith.constant 0.000000e+00 : f32
      %44 = vector.broadcast %cst_27 : f32 to vector<50x32xf32>
      %45 = arith.maximumf %43, %44 : vector<50x32xf32>
      %46 = arith.truncf %45 : vector<50x32xf32> to vector<50x32xbf16>
      %c0_28 = arith.constant 0 : index
      %c0_29 = arith.constant 0 : index
      %47 = vector.load %arg5[%c0_28, %c0_29] : memref<50x32xbf16, #tpu.memory_space<vmem>>, vector<50x32xbf16>
      tpu.vector_store %arg5[%c0_28, %c0_29], %46 {strides = array<i32>} : memref<50x32xbf16, #tpu.memory_space<vmem>>, vector<50x32xbf16>,
    } else {
    }
    return
  }
  func.func @transform_0(%arg0: i32) -> (i32, i32) {
    %c0_i32 = arith.constant 0 : i32
    %c0_i32_0 = arith.constant 0 : i32
    return %arg0, %c0_i32 : i32, i32
  }
  func.func @transform_1(%arg0: i32) -> (i32, i32) {
    %c0_i32 = arith.constant 0 : i32
    %c0_i32_0 = arith.constant 0 : i32
    %c0_i32_1 = arith.constant 0 : i32
    return %c0_i32, %c0_i32_0 : i32, i32
  }
  func.func @transform_2(%arg0: i32) -> (i32, i32) {
    %c0_i32 = arith.constant 0 : i32
    %c0_i32_0 = arith.constant 0 : i32
    %c0_i32_1 = arith.constant 0 : i32
    return %c0_i32, %c0_i32_0 : i32, i32
  }
  func.func @transform_3(%arg0: i32) -> (i32, i32) {
    %c0_i32 = arith.constant 0 : i32
    %c0_i32_0 = arith.constant 0 : i32
    %c0_i32_1 = arith.constant 0 : i32
    return %c0_i32, %c0_i32_0 : i32, i32
  }
  func.func @transform_4(%arg0: i32) -> (i32, i32) {
    %c0_i32 = arith.constant 0 : i32
    %c0_i32_0 = arith.constant 0 : i32
    %c0_i32_1 = arith.constant 0 : i32
    return %c0_i32, %c0_i32_0 : i32, i32
  }
}

module attributes {stable_mosaic.version = 11 : i64} {
  func.func @_fused_conv_bn_kernel(%arg0: i32, %arg1: memref<72x128xbf16, #tpu.memory_space<vmem>>, %arg2: memref<128x64xbf16, #tpu.memory_space<vmem>>, %arg3: memref<1x64xf32, #tpu.memory_space<vmem>>, %arg4: memref<1x64xf32, #tpu.memory_space<vmem>>, %arg5: memref<72x64xf32, #tpu.memory_space<vmem>>, %arg6: memref<72x64xf32, #tpu.memory_space<vmem>>, %arg7: memref<1x64xf32, #tpu.memory_space<vmem>>) attributes {dimension_semantics = [#tpu.dimension_semantics<arbitrary>], iteration_bounds = array<i64: 1>, scalar_prefetch = 0 : i64, scratch_operands = 2 : i64, tpu.core_type = #tpu.core_type<tc>, window_params = [{transform_indices = @transform_0, window_bounds = array<i64: 72, 128>}, {pipeline_mode = #tpu.pipeline_mode<synchronous>, transform_indices = @transform_1, window_bounds = array<i64: 128, 64>}, {pipeline_mode = #tpu.pipeline_mode<synchronous>, transform_indices = @transform_2, window_bounds = array<i64: 1, 64>}, {pipeline_mode = #tpu.pipeline_mode<synchronous>, transform_indices = @transform_3, window_bounds = array<i64: 1, 64>}, {pipeline_mode = #tpu.pipeline_mode<synchronous>, transform_indices = @transform_4, window_bounds = array<i64: 72, 64>}]} {
    %c0_i32 = arith.constant 0 : i32
    %0 = arith.cmpi eq, %arg0, %c0_i32 : i32
    %1 = arith.extui %0 : i1 to i32
    %c0_i32_0 = arith.constant 0 : i32
    %2 = arith.cmpi ne, %1, %c0_i32_0 : i32
    scf.if %2 {
      %cst_13 = arith.constant 0.000000e+00 : f32
      %15 = vector.broadcast %cst_13 : f32 to vector<1x64xf32>
      %c0_14 = arith.constant 0 : index
      %c0_15 = arith.constant 0 : index
      %16 = vector.load %arg7[%c0_14, %c0_15] : memref<1x64xf32, #tpu.memory_space<vmem>>, vector<1x64xf32>
      tpu.vector_store %arg7[%c0_14, %c0_15], %15 {strides = array<i32>} : memref<1x64xf32, #tpu.memory_space<vmem>>, vector<1x64xf32>,
    } else {
    }
    %c0 = arith.constant 0 : index
    %c0_1 = arith.constant 0 : index
    %3 = vector.load %arg1[%c0, %c0_1] : memref<72x128xbf16, #tpu.memory_space<vmem>>, vector<72x128xbf16>
    %c0_2 = arith.constant 0 : index
    %c0_3 = arith.constant 0 : index
    %4 = vector.load %arg2[%c0_2, %c0_3] : memref<128x64xbf16, #tpu.memory_space<vmem>>, vector<128x64xbf16>
    %cst = arith.constant dense<0.000000e+00> : vector<72x64xf32>
    %5 = tpu.matmul %3, %4, %cst {dimension_numbers = #tpu.dot_dimension_numbers<[1], [0], [0], [1], [0, 0, 1, 1], [], []>} : vector<72x128xbf16>, vector<128x64xbf16>, vector<72x64xf32> -> vector<72x64xf32>
    %c0_4 = arith.constant 0 : index
    %c0_5 = arith.constant 0 : index
    %6 = vector.load %arg6[%c0_4, %c0_5] : memref<72x64xf32, #tpu.memory_space<vmem>>, vector<72x64xf32>
    tpu.vector_store %arg6[%c0_4, %c0_5], %5 {strides = array<i32>} : memref<72x64xf32, #tpu.memory_space<vmem>>, vector<72x64xf32>,
    %c0_6 = arith.constant 0 : index
    %c0_7 = arith.constant 0 : index
    %7 = vector.load %arg7[%c0_6, %c0_7] : memref<1x64xf32, #tpu.memory_space<vmem>>, vector<1x64xf32>
    %cst_8 = arith.constant dense<0.000000e+00> : vector<64xf32>
    %8 = vector.multi_reduction <add>, %5, %cst_8 [0] : vector<72x64xf32> to vector<64xf32>
    %9 = vector.shape_cast %8 : vector<64xf32> to vector<1x64xf32>
    %10 = arith.addf %7, %9 : vector<1x64xf32>
    %c0_9 = arith.constant 0 : index
    %c0_10 = arith.constant 0 : index
    %11 = vector.load %arg7[%c0_9, %c0_10] : memref<1x64xf32, #tpu.memory_space<vmem>>, vector<1x64xf32>
    tpu.vector_store %arg7[%c0_9, %c0_10], %10 {strides = array<i32>} : memref<1x64xf32, #tpu.memory_space<vmem>>, vector<1x64xf32>,
    %c0_i32_11 = arith.constant 0 : i32
    %12 = arith.cmpi eq, %arg0, %c0_i32_11 : i32
    %13 = arith.extui %12 : i1 to i32
    %c0_i32_12 = arith.constant 0 : i32
    %14 = arith.cmpi ne, %13, %c0_i32_12 : i32
    scf.if %14 {
      %c0_13 = arith.constant 0 : index
      %c0_14 = arith.constant 0 : index
      %15 = vector.load %arg7[%c0_13, %c0_14] : memref<1x64xf32, #tpu.memory_space<vmem>>, vector<1x64xf32>
      %cst_15 = arith.constant 0.013888889 : f32
      %16 = vector.broadcast %cst_15 : f32 to vector<1x64xf32>
      %17 = arith.mulf %15, %16 : vector<1x64xf32>
      %c0_16 = arith.constant 0 : index
      %c0_17 = arith.constant 0 : index
      %18 = vector.load %arg6[%c0_16, %c0_17] : memref<72x64xf32, #tpu.memory_space<vmem>>, vector<72x64xf32>
      %19 = vector.broadcast %17 : vector<1x64xf32> to vector<72x64xf32>
      %20 = arith.subf %18, %19 : vector<72x64xf32>
      %21 = arith.mulf %20, %20 : vector<72x64xf32>
      %cst_18 = arith.constant dense<0.000000e+00> : vector<64xf32>
      %22 = vector.multi_reduction <add>, %21, %cst_18 [0] : vector<72x64xf32> to vector<64xf32>
      %23 = vector.shape_cast %22 : vector<64xf32> to vector<1x64xf32>
      %24 = arith.mulf %17, %17 : vector<1x64xf32>
      %cst_19 = arith.constant 0.000000e+00 : f32
      %25 = vector.broadcast %cst_19 : f32 to vector<1x64xf32>
      %26 = arith.mulf %25, %24 : vector<1x64xf32>
      %27 = arith.subf %23, %26 : vector<1x64xf32>
      %cst_20 = arith.constant 0.013888889 : f32
      %28 = vector.broadcast %cst_20 : f32 to vector<1x64xf32>
      %29 = arith.mulf %27, %28 : vector<1x64xf32>
      %cst_21 = arith.constant 0.000000e+00 : f32
      %30 = vector.broadcast %cst_21 : f32 to vector<1x64xf32>
      %31 = arith.maximumf %29, %30 : vector<1x64xf32>
      %cst_22 = arith.constant 9.99999974E-6 : f32
      %32 = vector.broadcast %cst_22 : f32 to vector<1x64xf32>
      %33 = arith.addf %31, %32 : vector<1x64xf32>
      %34 = math.rsqrt %33 : vector<1x64xf32>
      %c0_23 = arith.constant 0 : index
      %c0_24 = arith.constant 0 : index
      %35 = vector.load %arg3[%c0_23, %c0_24] : memref<1x64xf32, #tpu.memory_space<vmem>>, vector<1x64xf32>
      %36 = arith.mulf %35, %34 : vector<1x64xf32>
      %c0_25 = arith.constant 0 : index
      %c0_26 = arith.constant 0 : index
      %37 = vector.load %arg4[%c0_25, %c0_26] : memref<1x64xf32, #tpu.memory_space<vmem>>, vector<1x64xf32>
      %38 = arith.mulf %17, %36 : vector<1x64xf32>
      %39 = arith.subf %37, %38 : vector<1x64xf32>
      %40 = vector.broadcast %36 : vector<1x64xf32> to vector<72x64xf32>
      %41 = arith.mulf %18, %40 : vector<72x64xf32>
      %42 = vector.broadcast %39 : vector<1x64xf32> to vector<72x64xf32>
      %43 = arith.addf %41, %42 : vector<72x64xf32>
      %c0_27 = arith.constant 0 : index
      %c0_28 = arith.constant 0 : index
      %44 = vector.load %arg5[%c0_27, %c0_28] : memref<72x64xf32, #tpu.memory_space<vmem>>, vector<72x64xf32>
      tpu.vector_store %arg5[%c0_27, %c0_28], %43 {strides = array<i32>} : memref<72x64xf32, #tpu.memory_space<vmem>>, vector<72x64xf32>,
    } else {
    }
    return
  }
  func.func @transform_0(%arg0: i32) -> (i32, i32) {
    %c0_i32 = arith.constant 0 : i32
    %c0_i32_0 = arith.constant 0 : i32
    return %arg0, %c0_i32 : i32, i32
  }
  func.func @transform_1(%arg0: i32) -> (i32, i32) {
    %c0_i32 = arith.constant 0 : i32
    %c0_i32_0 = arith.constant 0 : i32
    %c0_i32_1 = arith.constant 0 : i32
    return %c0_i32, %c0_i32_0 : i32, i32
  }
  func.func @transform_2(%arg0: i32) -> (i32, i32) {
    %c0_i32 = arith.constant 0 : i32
    %c0_i32_0 = arith.constant 0 : i32
    %c0_i32_1 = arith.constant 0 : i32
    return %c0_i32, %c0_i32_0 : i32, i32
  }
  func.func @transform_3(%arg0: i32) -> (i32, i32) {
    %c0_i32 = arith.constant 0 : i32
    %c0_i32_0 = arith.constant 0 : i32
    %c0_i32_1 = arith.constant 0 : i32
    return %c0_i32, %c0_i32_0 : i32, i32
  }
  func.func @transform_4(%arg0: i32) -> (i32, i32) {
    %c0_i32 = arith.constant 0 : i32
    %c0_i32_0 = arith.constant 0 : i32
    %c0_i32_1 = arith.constant 0 : i32
    return %c0_i32, %c0_i32_0 : i32, i32
  }
}

</mosaic_0001>

<llo_original>
// kernel: encoder_forward.5
$region0: #{encoder_forward.5}
  #allocation0 [shape = 'u32[]', space=smem, size = 0x4, offset = 0x4, fixed_abs, tag = 'smem constant byte address 0x4 - core index']
  #allocation1 [shape = 'u32[144,128]{1,0:T(1,128)}', space=vmem, size = 0x12000, scoped, tag = 'internal scratch']
  #allocation2 [shape = 'f32[128,4]{1,0:T(8,128)}', space=vmem, size = 0x10000, scoped, tag = 'scratch operand']
  #allocation3 [shape = 'f32[1,4]{1,0:T(1,128)}', space=vmem, size = 0x200, scoped, tag = 'scratch operand']
  %s0 = inlined_call_operand.vmem [shape: bf16[128,64], index: 0, kind: input, shape index: {}]
  %s1 = inlined_call_operand.vmem [shape: bf16[64,4], index: 1, kind: input, shape index: {}]
  %s2 = inlined_call_operand.vmem [shape: f32[1,4], index: 2, kind: input, shape index: {}]
  %s3 = inlined_call_operand.vmem [shape: f32[1,4], index: 3, kind: input, shape index: {}]
  %s4 = inlined_call_operand.vmem [shape: bf16[128,4], index: 4, kind: output, shape index: {}]
  %s5 = sld [smem:[#allocation0]]
  $region34: #{encoder_forward.5} parent=0
    _
  %s7 = ssub.s32 1, %s5
  %s8 = scalar_select 0, %s7, %s5
  // Predicated region
  $region2: #{encoder_forward.5} parent=0 // pred_check
    _
  $region3: #{encoder_forward.5} parent=0 // pred_check_branch
    %10 = sbr.rel (0) target = $region5
  $region4: #{encoder_forward.5} parent=0 // pred_region
    _
  $region5: #{encoder_forward.5} parent=0 // pred_fallthru
    _
  // Predicated region
  $region6: #{encoder_forward.5} parent=0 // pred_check
    _
  $region7: #{encoder_forward.5} parent=0 // pred_check_branch
    %12 = sbr.rel (0) target = $region9
  $region8: #{encoder_forward.5} parent=0 // pred_region
    _
  $region9: #{encoder_forward.5} parent=0 // pred_fallthru
    _
  // Predicated region
  $region10: #{encoder_forward.5} parent=0 // pred_check
    _
  $region11: #{encoder_forward.5} parent=0 // pred_check_branch
    %14 = sbr.rel (0) target = $region13
  $region12: #{encoder_forward.5} parent=0 // pred_region
    _
  $region13: #{encoder_forward.5} parent=0 // pred_fallthru
    _
  // Predicated region
  $region14: #{encoder_forward.5} parent=0 // pred_check
    _
  $region15: #{encoder_forward.5} parent=0 // pred_check_branch
    %16 = sbr.rel (0) target = $region17
  $region16: #{encoder_forward.5} parent=0 // pred_region
    _
  $region17: #{encoder_forward.5} parent=0 // pred_fallthru
    _
  %p18 = scmp.eq.s32.totalorder 0, 0
  // Predicated region
  $region18: #{encoder_forward.5} parent=0 // pred_check
    %p19 = pneg %p18
  $region19: #{encoder_forward.5} parent=0 // pred_check_branch
    %21 = sbr.rel (%p19) target = $region21
  $region20: #{encoder_forward.5} parent=0 // pred_region
    %vm22 = vcmask 24576
    %23 = vst.msk [vmem:[#allocation3] sm:$0x1] %vm22, 0.0
  $region21: #{encoder_forward.5} parent=0 // pred_fallthru
    _
  %v24 = vld [vmem:[%s0] sm:$0xf]
  %v25 = vld [vmem:[%s0 + $0x4] sm:$0xf]
  %v26 = vld [vmem:[%s0 + $0x8] sm:$0xf]
  %v27 = vld [vmem:[%s0 + $0xc] sm:$0xf]
  %v28 = vld [vmem:[%s0 + $0x10] sm:$0xf]
  %v29 = vld [vmem:[%s0 + $0x14] sm:$0xf]
  %v30 = vld [vmem:[%s0 + $0x18] sm:$0xf]
  %v31 = vld [vmem:[%s0 + $0x1c] sm:$0xf]
  %v32 = vld [vmem:[%s0 + $0x20] sm:$0xf]
  %v33 = vld [vmem:[%s0 + $0x24] sm:$0xf]
  %v34 = vld [vmem:[%s0 + $0x28] sm:$0xf]
  %v35 = vld [vmem:[%s0 + $0x2c] sm:$0xf]
  %v36 = vld [vmem:[%s0 + $0x30] sm:$0xf]
  %v37 = vld [vmem:[%s0 + $0x34] sm:$0xf]
  %v38 = vld [vmem:[%s0 + $0x38] sm:$0xf]
  %v39 = vld [vmem:[%s0 + $0x3c] sm:$0xf]
  %v40 = vld [vmem:[%s1] sm:$0xf]
  %v41 = vld [vmem:[%s1 + $0x4] sm:$0xf]
  %v42 = vld [vmem:[%s1 + $0x8] sm:$0xf]
  %v43 = vld [vmem:[%s1 + $0xc] sm:$0xf]
  %v44 = vld [vmem:[%s1 + $0x10] sm:$0xf]
  %v45 = vld [vmem:[%s1 + $0x14] sm:$0xf]
  %v46 = vld [vmem:[%s1 + $0x18] sm:$0xf]
  %v47 = vld [vmem:[%s1 + $0x1c] sm:$0xf]
  %v64 = vunpack.c.l.b16 %v24
  %v65 = vunpack.c.l.b16 %v25
  %v66 = vunpack.c.l.b16 %v26
  %v67 = vunpack.c.l.b16 %v27
  %v68 = vunpack.c.l.b16 %v28
  %v69 = vunpack.c.l.b16 %v29
  %v70 = vunpack.c.l.b16 %v30
  %v71 = vunpack.c.l.b16 %v31
  %v72 = vunpack.c.l.b16 %v32
  %v73 = vunpack.c.l.b16 %v33
  %v74 = vunpack.c.l.b16 %v34
  %v75 = vunpack.c.l.b16 %v35
  %v76 = vunpack.c.l.b16 %v36
  %v77 = vunpack.c.l.b16 %v37
  %v78 = vunpack.c.l.b16 %v38
  %v79 = vunpack.c.l.b16 %v39
  %v80 = vpack.c.b16 %v65, %v64
  %v81 = vpack.c.b16 %v67, %v66
  %v82 = vpack.c.b16 %v69, %v68
  %v83 = vpack.c.b16 %v71, %v70
  %v84 = vpack.c.b16 %v73, %v72
  %v85 = vpack.c.b16 %v75, %v74
  %v86 = vpack.c.b16 %v77, %v76
  %v87 = vpack.c.b16 %v79, %v78
  %v96 = vunpack.c.l.b16 %v40
  %v97 = vunpack.c.l.b16 %v41
  %v98 = vunpack.c.l.b16 %v42
  %v99 = vunpack.c.l.b16 %v43
  %v100 = vunpack.c.l.b16 %v44
  %v101 = vunpack.c.l.b16 %v45
  %v102 = vunpack.c.l.b16 %v46
  %v103 = vunpack.c.l.b16 %v47
  %v104 = vpack.c.b16 %v97, %v96
  %v105 = vpack.c.b16 %v99, %v98
  %v106 = vpack.c.b16 %v101, %v100
  %v107 = vpack.c.b16 %v103, %v102
  %vm112 = vcmask 523264
  %v114 = vsel %vm112, %v80, 0
  %v117 = vsel %vm112, %v81, 0
  %v120 = vsel %vm112, %v82, 0
  %v123 = vsel %vm112, %v83, 0
  %v126 = vsel %vm112, %v84, 0
  %v129 = vsel %vm112, %v85, 0
  %v132 = vsel %vm112, %v86, 0
  %v135 = vsel %vm112, %v87, 0
  %137 = vmatprep.subr.bf16.mxu0 0
  %138 = vmatpush1.bf16.msra.mxu0 %v104
  %139 = vmatprep.subr.bf16.mxu0 0
  %140 = vmatpush1.bf16.msra.mxu0 %v105
  %141 = vmatprep.subr.bf16.mxu0 0
  %142 = vmatpush1.bf16.msra.mxu0 %v106
  %143 = vmatprep.subr.bf16.mxu0 0
  %144 = vmatpush1.bf16.msra.mxu0 %v107
  %145 = vmatprep.subr.bf16.mxu0 0
  %146 = vmatpush1.bf16.msra.mxu0 0
  %147 = vmatprep.subr.bf16.mxu0 0
  %148 = vmatpush1.bf16.msra.mxu0 0
  %149 = vmatprep.subr.bf16.mxu0 0
  %150 = vmatpush1.bf16.msra.mxu0 0
  %151 = vmatprep.subr.bf16.mxu0 0
  %152 = vmatpush1.bf16.msra.mxu0 0
  %153 = vmatprep.subr.bf16.mxu0 0
  %154 = vmatpush1.bf16.msra.mxu0 0
  %155 = vmatprep.subr.bf16.mxu0 0
  %156 = vmatpush1.bf16.msra.mxu0 0
  %157 = vmatprep.subr.bf16.mxu0 0
  %158 = vmatpush1.bf16.msra.mxu0 0
  %159 = vmatprep.subr.bf16.mxu0 0
  %160 = vmatpush1.bf16.msra.mxu0 0
  %161 = vmatprep.subr.bf16.mxu0 0
  %162 = vmatpush1.bf16.msra.mxu0 0
  %163 = vmatprep.subr.bf16.mxu0 0
  %164 = vmatpush1.bf16.msra.mxu0 0
  %165 = vmatprep.subr.bf16.mxu0 0
  %166 = vmatpush1.bf16.msra.mxu0 0
  %167 = vmatprep.subr.bf16.mxu0 0
  %168 = vmatpush1.bf16.msra.mxu0 0
  %169 = vmatprep.mubr.bf16.mxu0 0
  %170 = vmatmul.mubr.bf16.gmra.mrb[0].mxu0 %v114
  %v171 = vpop.f32.mrb[0].mxu0
  %v172 = vadd.f32 0.0, %v171
  %v173 = vpop.f32.mrb[0].mxu0
  %v174 = vpop.f32.mrb[0].mxu0
  %v175 = vadd.f32 0.0, %v174
  %v176 = vpop.f32.mrb[0].mxu0
  %177 = vmatprep.mubr.bf16.mxu0 0
  %178 = vmatmul.mubr.bf16.gmra.mrb[0].mxu0 %v117
  %v179 = vpop.f32.mrb[0].mxu0
  %v180 = vadd.f32 0.0, %v179
  %v181 = vpop.f32.mrb[0].mxu0
  %v182 = vpop.f32.mrb[0].mxu0
  %v183 = vadd.f32 0.0, %v182
  %v184 = vpop.f32.mrb[0].mxu0
  %185 = vmatprep.mubr.bf16.mxu0 0
  %186 = vmatmul.mubr.bf16.gmra.mrb[0].mxu0 %v120
  %v187 = vpop.f32.mrb[0].mxu0
  %v188 = vadd.f32 0.0, %v187
  %v189 = vpop.f32.mrb[0].mxu0
  %v190 = vpop.f32.mrb[0].mxu0
  %v191 = vadd.f32 0.0, %v190
  %v192 = vpop.f32.mrb[0].mxu0
  %193 = vmatprep.mubr.bf16.mxu0 0
  %194 = vmatmul.mubr.bf16.gmra.mrb[0].mxu0 %v123
  %v195 = vpop.f32.mrb[0].mxu0
  %v196 = vadd.f32 0.0, %v195
  %v197 = vpop.f32.mrb[0].mxu0
  %v198 = vpop.f32.mrb[0].mxu0
  %v199 = vadd.f32 0.0, %v198
  %v200 = vpop.f32.mrb[0].mxu0
  %201 = vmatprep.mubr.bf16.mxu0 0
  %202 = vmatmul.mubr.bf16.gmra.mrb[0].mxu0 %v126
  %v203 = vpop.f32.mrb[0].mxu0
  %v204 = vadd.f32 0.0, %v203
  %v205 = vpop.f32.mrb[0].mxu0
  %v206 = vpop.f32.mrb[0].mxu0
  %v207 = vadd.f32 0.0, %v206
  %v208 = vpop.f32.mrb[0].mxu0
  %209 = vmatprep.mubr.bf16.mxu0 0
  %210 = vmatmul.mubr.bf16.gmra.mrb[0].mxu0 %v129
  %v211 = vpop.f32.mrb[0].mxu0
  %v212 = vadd.f32 0.0, %v211
  %v213 = vpop.f32.mrb[0].mxu0
  %v214 = vpop.f32.mrb[0].mxu0
  %v215 = vadd.f32 0.0, %v214
  %v216 = vpop.f32.mrb[0].mxu0
  %217 = vmatprep.mubr.bf16.mxu0 0
  %218 = vmatmul.mubr.bf16.gmra.mrb[0].mxu0 %v132
  %v219 = vpop.f32.mrb[0].mxu0
  %v220 = vadd.f32 0.0, %v219
  %v221 = vpop.f32.mrb[0].mxu0
  %v222 = vpop.f32.mrb[0].mxu0
  %v223 = vadd.f32 0.0, %v222
  %v224 = vpop.f32.mrb[0].mxu0
  %225 = vmatprep.mubr.bf16.mxu0 0
  %226 = vmatmul.mubr.bf16.gmra.mrb[0].mxu0 %v135
  %v227 = vpop.f32.mrb[0].mxu0
  %v228 = vadd.f32 0.0, %v227
  %v229 = vpop.f32.mrb[0].mxu0
  %v230 = vpop.f32.mrb[0].mxu0
  %v231 = vadd.f32 0.0, %v230
  %v232 = vpop.f32.mrb[0].mxu0
  %233 = vdwg.mxu0
  %vm234 = vcmask 31744
  %235 = vst.msk [vmem:[#allocation2] sm:$0xff] %vm234, %v172
  %236 = vst.msk [vmem:[#allocation2 + $0x8] sm:$0xff] %vm234, %v175
  %237 = vst.msk [vmem:[#allocation2 + $0x10] sm:$0xff] %vm234, %v180
  %238 = vst.msk [vmem:[#allocation2 + $0x18] sm:$0xff] %vm234, %v183
  %239 = vst.msk [vmem:[#allocation2 + $0x20] sm:$0xff] %vm234, %v188
  %240 = vst.msk [vmem:[#allocation2 + $0x28] sm:$0xff] %vm234, %v191
  %241 = vst.msk [vmem:[#allocation2 + $0x30] sm:$0xff] %vm234, %v196
  %242 = vst.msk [vmem:[#allocation2 + $0x38] sm:$0xff] %vm234, %v199
  %243 = vst.msk [vmem:[#allocation2 + $0x40] sm:$0xff] %vm234, %v204
  %244 = vst.msk [vmem:[#allocation2 + $0x48] sm:$0xff] %vm234, %v207
  %245 = vst.msk [vmem:[#allocation2 + $0x50] sm:$0xff] %vm234, %v212
  %246 = vst.msk [vmem:[#allocation2 + $0x58] sm:$0xff] %vm234, %v215
  %247 = vst.msk [vmem:[#allocation2 + $0x60] sm:$0xff] %vm234, %v220
  %248 = vst.msk [vmem:[#allocation2 + $0x68] sm:$0xff] %vm234, %v223
  %249 = vst.msk [vmem:[#allocation2 + $0x70] sm:$0xff] %vm234, %v228
  %250 = vst.msk [vmem:[#allocation2 + $0x78] sm:$0xff] %vm234, %v231
  %v251 = vld [vmem:[#allocation3] sm:$0x1]
  %v252 = vsel %vm234, %v172, 0.0
  %v253 = vsel %vm234, %v175, 0.0
  %v254 = vadd.f32 %v252, %v253
  %v255 = vsel %vm234, %v180, 0.0
  %v256 = vadd.f32 %v254, %v255
  %v257 = vsel %vm234, %v183, 0.0
  %v258 = vadd.f32 %v256, %v257
  %v259 = vsel %vm234, %v188, 0.0
  %v260 = vadd.f32 %v258, %v259
  %v261 = vsel %vm234, %v191, 0.0
  %v262 = vadd.f32 %v260, %v261
  %v263 = vsel %vm234, %v196, 0.0
  %v264 = vadd.f32 %v262, %v263
  %v265 = vsel %vm234, %v199, 0.0
  %v266 = vadd.f32 %v264, %v265
  %v267 = vsel %vm234, %v204, 0.0
  %v268 = vadd.f32 %v266, %v267
  %v269 = vsel %vm234, %v207, 0.0
  %v270 = vadd.f32 %v268, %v269
  %v271 = vsel %vm234, %v212, 0.0
  %v272 = vadd.f32 %v270, %v271
  %v273 = vsel %vm234, %v215, 0.0
  %v274 = vadd.f32 %v272, %v273
  %v275 = vsel %vm234, %v220, 0.0
  %v276 = vadd.f32 %v274, %v275
  %v277 = vsel %vm234, %v223, 0.0
  %v278 = vadd.f32 %v276, %v277
  %v279 = vsel %vm234, %v228, 0.0
  %v280 = vadd.f32 %v278, %v279
  %v281 = vsel %vm234, %v231, 0.0
  %v282 = vadd.f32 %v280, %v281
  %v283 = vrot.slane %v282, 4
  %v284 = vadd.f32 %v282, %v283
  %v285 = vrot.slane %v284, 2
  %v286 = vadd.f32 %v284, %v285
  %v287 = vrot.slane %v286, 1
  %v288 = vadd.f32 %v286, %v287
  %v289 = vadd.f32 %v251, %v288
  %vm290 = vcmask 24576
  %291 = vst.msk [vmem:[#allocation3] sm:$0x1] %vm290, %v289
  // Predicated region
  $region22: #{encoder_forward.5} parent=0 // pred_check
    %p292 = pneg %p18
  $region23: #{encoder_forward.5} parent=0 // pred_check_branch
    %294 = sbr.rel (%p292) target = $region25
  $region24: #{encoder_forward.5} parent=0 // pred_region
    %v295 = vld [vmem:[#allocation3] sm:$0x1]
    %v296 = vmul.f32 %v295, 0.0078125
    %v297 = vld [vmem:[#allocation2] sm:$0xff]
    %v298 = vld [vmem:[#allocation2 + $0x8] sm:$0xff]
    %v299 = vld [vmem:[#allocation2 + $0x10] sm:$0xff]
    %v300 = vld [vmem:[#allocation2 + $0x18] sm:$0xff]
    %v301 = vld [vmem:[#allocation2 + $0x20] sm:$0xff]
    %v302 = vld [vmem:[#allocation2 + $0x28] sm:$0xff]
    %v303 = vld [vmem:[#allocation2 + $0x30] sm:$0xff]
    %v304 = vld [vmem:[#allocation2 + $0x38] sm:$0xff]
    %v305 = vld [vmem:[#allocation2 + $0x40] sm:$0xff]
    %v306 = vld [vmem:[#allocation2 + $0x48] sm:$0xff]
    %v307 = vld [vmem:[#allocation2 + $0x50] sm:$0xff]
    %v308 = vld [vmem:[#allocation2 + $0x58] sm:$0xff]
    %v309 = vld [vmem:[#allocation2 + $0x60] sm:$0xff]
    %v310 = vld [vmem:[#allocation2 + $0x68] sm:$0xff]
    %v311 = vld [vmem:[#allocation2 + $0x70] sm:$0xff]
    %v312 = vld [vmem:[#allocation2 + $0x78] sm:$0xff]
    %v314 = vlaneseq
    %v315 = vshrl.u32 %v314, 7
    %v316 = vsub.s32 0, %v315
    %v317 = vrot.slane %v296, %v316
    %v319 = vsub.f32 %v297, %v317
    %v320 = vsub.f32 %v298, %v317
    %v321 = vsub.f32 %v299, %v317
    %v322 = vsub.f32 %v300, %v317
    %v323 = vsub.f32 %v301, %v317
    %v324 = vsub.f32 %v302, %v317
    %v325 = vsub.f32 %v303, %v317
    %v326 = vsub.f32 %v304, %v317
    %v327 = vsub.f32 %v305, %v317
    %v328 = vsub.f32 %v306, %v317
    %v329 = vsub.f32 %v307, %v317
    %v330 = vsub.f32 %v308, %v317
    %v331 = vsub.f32 %v309, %v317
    %v332 = vsub.f32 %v310, %v317
    %v333 = vsub.f32 %v311, %v317
    %v334 = vsub.f32 %v312, %v317
    %v335 = vmul.f32 %v319, %v319
    %v336 = vmul.f32 %v320, %v320
    %v337 = vmul.f32 %v321, %v321
    %v338 = vmul.f32 %v322, %v322
    %v339 = vmul.f32 %v323, %v323
    %v340 = vmul.f32 %v324, %v324
    %v341 = vmul.f32 %v325, %v325
    %v342 = vmul.f32 %v326, %v326
    %v343 = vmul.f32 %v327, %v327
    %v344 = vmul.f32 %v328, %v328
    %v345 = vmul.f32 %v329, %v329
    %v346 = vmul.f32 %v330, %v330
    %v347 = vmul.f32 %v331, %v331
    %v348 = vmul.f32 %v332, %v332
    %v349 = vmul.f32 %v333, %v333
    %v350 = vmul.f32 %v334, %v334
    %v351 = vsel %vm234, %v335, 0.0
    %v352 = vsel %vm234, %v336, 0.0
    %v353 = vadd.f32 %v351, %v352
    %v354 = vsel %vm234, %v337, 0.0
    %v355 = vadd.f32 %v353, %v354
    %v356 = vsel %vm234, %v338, 0.0
    %v357 = vadd.f32 %v355, %v356
    %v358 = vsel %vm234, %v339, 0.0
    %v359 = vadd.f32 %v357, %v358
    %v360 = vsel %vm234, %v340, 0.0
    %v361 = vadd.f32 %v359, %v360
    %v362 = vsel %vm234, %v341, 0.0
    %v363 = vadd.f32 %v361, %v362
    %v364 = vsel %vm234, %v342, 0.0
    %v365 = vadd.f32 %v363, %v364
    %v366 = vsel %vm234, %v343, 0.0
    %v367 = vadd.f32 %v365, %v366
    %v368 = vsel %vm234, %v344, 0.0
    %v369 = vadd.f32 %v367, %v368
    %v370 = vsel %vm234, %v345, 0.0
    %v371 = vadd.f32 %v369, %v370
    %v372 = vsel %vm234, %v346, 0.0
    %v373 = vadd.f32 %v371, %v372
    %v374 = vsel %vm234, %v347, 0.0
    %v375 = vadd.f32 %v373, %v374
    %v376 = vsel %vm234, %v348, 0.0
    %v377 = vadd.f32 %v375, %v376
    %v378 = vsel %vm234, %v349, 0.0
    %v379 = vadd.f32 %v377, %v378
    %v380 = vsel %vm234, %v350, 0.0
    %v381 = vadd.f32 %v379, %v380
    %v382 = vrot.slane %v381, 4
    %v383 = vadd.f32 %v381, %v382
    %v384 = vrot.slane %v383, 2
    %v385 = vadd.f32 %v383, %v384
    %v386 = vrot.slane %v385, 1
    %v387 = vadd.f32 %v385, %v386
    %v388 = vmul.f32 %v296, %v296
    %v389 = vmul.f32 %v388, 0.0
    %v390 = vsub.f32 %v387, %v389
    %v391 = vmul.f32 %v390, 0.0078125
    %v392 = vmax.f32 %v391, 0.0
    %v393 = vadd.f32 %v392, 1e-05
    %v394 = vrsqrt.pop %v393
    %v395 = vld [vmem:[%s2] sm:$0x1]
    %v396 = vmul.f32 %v395, %v394
    %v397 = vld [vmem:[%s3] sm:$0x1]
    %v398 = vmul.f32 %v296, %v396
    %v399 = vsub.f32 %v397, %v398
    %v401 = vlaneseq
    %v402 = vshrl.u32 %v401, 7
    %v403 = vsub.s32 0, %v402
    %v404 = vrot.slane %v396, %v403
    %v406 = vmul.f32 %v297, %v404
    %v407 = vmul.f32 %v298, %v404
    %v408 = vmul.f32 %v299, %v404
    %v409 = vmul.f32 %v300, %v404
    %v410 = vmul.f32 %v301, %v404
    %v411 = vmul.f32 %v302, %v404
    %v412 = vmul.f32 %v303, %v404
    %v413 = vmul.f32 %v304, %v404
    %v414 = vmul.f32 %v305, %v404
    %v415 = vmul.f32 %v306, %v404
    %v416 = vmul.f32 %v307, %v404
    %v417 = vmul.f32 %v308, %v404
    %v418 = vmul.f32 %v309, %v404
    %v419 = vmul.f32 %v310, %v404
    %v420 = vmul.f32 %v311, %v404
    %v421 = vmul.f32 %v312, %v404
    %v423 = vlaneseq
    %v424 = vshrl.u32 %v423, 7
    %v425 = vsub.s32 0, %v424
    %v426 = vrot.slane %v399, %v425
    %v428 = vadd.f32 %v406, %v426
    %v429 = vadd.f32 %v407, %v426
    %v430 = vadd.f32 %v408, %v426
    %v431 = vadd.f32 %v409, %v426
    %v432 = vadd.f32 %v410, %v426
    %v433 = vadd.f32 %v411, %v426
    %v434 = vadd.f32 %v412, %v426
    %v435 = vadd.f32 %v413, %v426
    %v436 = vadd.f32 %v414, %v426
    %v437 = vadd.f32 %v415, %v426
    %v438 = vadd.f32 %v416, %v426
    %v439 = vadd.f32 %v417, %v426
    %v440 = vadd.f32 %v418, %v426
    %v441 = vadd.f32 %v419, %v426
    %v442 = vadd.f32 %v420, %v426
    %v443 = vadd.f32 %v421, %v426
    %v444 = vmax.f32 %v428, 0.0
    %v445 = vmax.f32 %v429, 0.0
    %v446 = vmax.f32 %v430, 0.0
    %v447 = vmax.f32 %v431, 0.0
    %v448 = vmax.f32 %v432, 0.0
    %v449 = vmax.f32 %v433, 0.0
    %v450 = vmax.f32 %v434, 0.0
    %v451 = vmax.f32 %v435, 0.0
    %v452 = vmax.f32 %v436, 0.0
    %v453 = vmax.f32 %v437, 0.0
    %v454 = vmax.f32 %v438, 0.0
    %v455 = vmax.f32 %v439, 0.0
    %v456 = vmax.f32 %v440, 0.0
    %v457 = vmax.f32 %v441, 0.0
    %v458 = vmax.f32 %v442, 0.0
    %v459 = vmax.f32 %v443, 0.0
    %v460 = vpack.c.bf16 %v445, %v444
    %v461 = vpack.c.bf16 %v447, %v446
    %v462 = vpack.c.bf16 %v449, %v448
    %v463 = vpack.c.bf16 %v451, %v450
    %v464 = vpack.c.bf16 %v453, %v452
    %v465 = vpack.c.bf16 %v455, %v454
    %v466 = vpack.c.bf16 %v457, %v456
    %v467 = vpack.c.bf16 %v459, %v458
    %v476 = vunpack.c.l.b16 %v460
    %v477 = vunpack.c.h.b16 %v460
    %v478 = vunpack.c.l.b16 %v461
    %v479 = vunpack.c.h.b16 %v461
    %v480 = vunpack.c.l.b16 %v462
    %v481 = vunpack.c.h.b16 %v462
    %v482 = vunpack.c.l.b16 %v463
    %v483 = vunpack.c.h.b16 %v463
    %v484 = vunpack.c.l.b16 %v464
    %v485 = vunpack.c.h.b16 %v464
    %v486 = vunpack.c.l.b16 %v465
    %v487 = vunpack.c.h.b16 %v465
    %v488 = vunpack.c.l.b16 %v466
    %v489 = vunpack.c.h.b16 %v466
    %v490 = vunpack.c.l.b16 %v467
    %v491 = vunpack.c.h.b16 %v467
    %v492 = vpack.c.b16 %v476, %v476
    %v493 = vpack.c.b16 %v477, %v477
    %v494 = vpack.c.b16 %v478, %v478
    %v495 = vpack.c.b16 %v479, %v479
    %v496 = vpack.c.b16 %v480, %v480
    %v497 = vpack.c.b16 %v481, %v481
    %v498 = vpack.c.b16 %v482, %v482
    %v499 = vpack.c.b16 %v483, %v483
    %v500 = vpack.c.b16 %v484, %v484
    %v501 = vpack.c.b16 %v485, %v485
    %v502 = vpack.c.b16 %v486, %v486
    %v503 = vpack.c.b16 %v487, %v487
    %v504 = vpack.c.b16 %v488, %v488
    %v505 = vpack.c.b16 %v489, %v489
    %v506 = vpack.c.b16 %v490, %v490
    %v507 = vpack.c.b16 %v491, %v491
    %vm524 = vcmask 27648
    %525 = vst.msk [vmem:[%s4] sm:$0xf] %vm524, %v492
    %526 = vst.msk [vmem:[%s4 + $0x4] sm:$0xf] %vm524, %v493
    %527 = vst.msk [vmem:[%s4 + $0x8] sm:$0xf] %vm524, %v494
    %528 = vst.msk [vmem:[%s4 + $0xc] sm:$0xf] %vm524, %v495
    %529 = vst.msk [vmem:[%s4 + $0x10] sm:$0xf] %vm524, %v496
    %530 = vst.msk [vmem:[%s4 + $0x14] sm:$0xf] %vm524, %v497
    %531 = vst.msk [vmem:[%s4 + $0x18] sm:$0xf] %vm524, %v498
    %532 = vst.msk [vmem:[%s4 + $0x1c] sm:$0xf] %vm524, %v499
    %533 = vst.msk [vmem:[%s4 + $0x20] sm:$0xf] %vm524, %v500
    %534 = vst.msk [vmem:[%s4 + $0x24] sm:$0xf] %vm524, %v501
    %535 = vst.msk [vmem:[%s4 + $0x28] sm:$0xf] %vm524, %v502
    %536 = vst.msk [vmem:[%s4 + $0x2c] sm:$0xf] %vm524, %v503
    %537 = vst.msk [vmem:[%s4 + $0x30] sm:$0xf] %vm524, %v504
    %538 = vst.msk [vmem:[%s4 + $0x34] sm:$0xf] %vm524, %v505
    %539 = vst.msk [vmem:[%s4 + $0x38] sm:$0xf] %vm524, %v506
    %540 = vst.msk [vmem:[%s4 + $0x3c] sm:$0xf] %vm524, %v507
  $region25: #{encoder_forward.5} parent=0 // pred_fallthru
    _
  // Predicated region
  $region26: #{encoder_forward.5} parent=0 // pred_check
    _
  $region27: #{encoder_forward.5} parent=0 // pred_check_branch
    %542 = sbr.rel (0) target = $region29
  $region28: #{encoder_forward.5} parent=0 // pred_region
    _
  $region29: #{encoder_forward.5} parent=0 // pred_fallthru
    _
  // Predicated region
  $region30: #{encoder_forward.5} parent=0 // pred_check
    _
  $region31: #{encoder_forward.5} parent=0 // pred_check_branch
    %544 = sbr.rel (0) target = $region33
  $region32: #{encoder_forward.5} parent=0 // pred_region
    _
  $region33: #{encoder_forward.5} parent=0 // pred_fallthru
    _

// kernel: encoder_forward.6
$region0: #{encoder_forward.6}
  #allocation0 [shape = 'u32[]', space=smem, size = 0x4, offset = 0x4, fixed_abs, tag = 'smem constant byte address 0x4 - core index']
  #allocation1 [shape = 'u32[144,128]{1,0:T(1,128)}', space=vmem, size = 0x12000, scoped, tag = 'internal scratch']
  #allocation2 [shape = 'f32[32,8]{1,0:T(8,128)}', space=vmem, size = 0x4000, scoped, tag = 'scratch operand']
  #allocation3 [shape = 'f32[1,8]{1,0:T(1,128)}', space=vmem, size = 0x200, scoped, tag = 'scratch operand']
  %s0 = inlined_call_operand.vmem [shape: bf16[32,64], index: 0, kind: input, shape index: {}]
  %s1 = inlined_call_operand.vmem [shape: bf16[64,8], index: 1, kind: input, shape index: {}]
  %s2 = inlined_call_operand.vmem [shape: f32[1,8], index: 2, kind: input, shape index: {}]
  %s3 = inlined_call_operand.vmem [shape: f32[1,8], index: 3, kind: input, shape index: {}]
  %s4 = inlined_call_operand.vmem [shape: bf16[32,8], index: 4, kind: output, shape index: {}]
  %s5 = sld [smem:[#allocation0]]
  $region34: #{encoder_forward.6} parent=0
    _
  %s7 = ssub.s32 1, %s5
  %s8 = scalar_select 0, %s7, %s5
  // Predicated region
  $region2: #{encoder_forward.6} parent=0 // pred_check
    _
  $region3: #{encoder_forward.6} parent=0 // pred_check_branch
    %10 = sbr.rel (0) target = $region5
  $region4: #{encoder_forward.6} parent=0 // pred_region
    _
  $region5: #{encoder_forward.6} parent=0 // pred_fallthru
    _
  // Predicated region
  $region6: #{encoder_forward.6} parent=0 // pred_check
    _
  $region7: #{encoder_forward.6} parent=0 // pred_check_branch
    %12 = sbr.rel (0) target = $region9
  $region8: #{encoder_forward.6} parent=0 // pred_region
    _
  $region9: #{encoder_forward.6} parent=0 // pred_fallthru
    _
  // Predicated region
  $region10: #{encoder_forward.6} parent=0 // pred_check
    _
  $region11: #{encoder_forward.6} parent=0 // pred_check_branch
    %14 = sbr.rel (0) target = $region13
  $region12: #{encoder_forward.6} parent=0 // pred_region
    _
  $region13: #{encoder_forward.6} parent=0 // pred_fallthru
    _
  // Predicated region
  $region14: #{encoder_forward.6} parent=0 // pred_check
    _
  $region15: #{encoder_forward.6} parent=0 // pred_check_branch
    %16 = sbr.rel (0) target = $region17
  $region16: #{encoder_forward.6} parent=0 // pred_region
    _
  $region17: #{encoder_forward.6} parent=0 // pred_fallthru
    _
  %p18 = scmp.eq.s32.totalorder 0, 0
  // Predicated region
  $region18: #{encoder_forward.6} parent=0 // pred_check
    %p19 = pneg %p18
  $region19: #{encoder_forward.6} parent=0 // pred_check_branch
    %21 = sbr.rel (%p19) target = $region21
  $region20: #{encoder_forward.6} parent=0 // pred_region
    %vm22 = vcmask 57344
    %23 = vst.msk [vmem:[#allocation3] sm:$0x1] %vm22, 0.0
  $region21: #{encoder_forward.6} parent=0 // pred_fallthru
    _
  %v24 = vld [vmem:[%s0] sm:$0xf]
  %v25 = vld [vmem:[%s0 + $0x4] sm:$0xf]
  %v26 = vld [vmem:[%s0 + $0x8] sm:$0xf]
  %v27 = vld [vmem:[%s0 + $0xc] sm:$0xf]
  %v28 = vld [vmem:[%s1] sm:$0xf]
  %v29 = vld [vmem:[%s1 + $0x4] sm:$0xf]
  %v30 = vld [vmem:[%s1 + $0x8] sm:$0xf]
  %v31 = vld [vmem:[%s1 + $0xc] sm:$0xf]
  %v32 = vld [vmem:[%s1 + $0x10] sm:$0xf]
  %v33 = vld [vmem:[%s1 + $0x14] sm:$0xf]
  %v34 = vld [vmem:[%s1 + $0x18] sm:$0xf]
  %v35 = vld [vmem:[%s1 + $0x1c] sm:$0xf]
  %v40 = vunpack.c.l.b16 %v24
  %v41 = vunpack.c.l.b16 %v25
  %v42 = vunpack.c.l.b16 %v26
  %v43 = vunpack.c.l.b16 %v27
  %v44 = vpack.c.b16 %v41, %v40
  %v45 = vpack.c.b16 %v43, %v42
  %v54 = vunpack.c.l.b16 %v28
  %v55 = vunpack.c.l.b16 %v29
  %v56 = vunpack.c.l.b16 %v30
  %v57 = vunpack.c.l.b16 %v31
  %v58 = vunpack.c.l.b16 %v32
  %v59 = vunpack.c.l.b16 %v33
  %v60 = vunpack.c.l.b16 %v34
  %v61 = vunpack.c.l.b16 %v35
  %v62 = vpack.c.b16 %v55, %v54
  %v63 = vpack.c.b16 %v57, %v56
  %v64 = vpack.c.b16 %v59, %v58
  %v65 = vpack.c.b16 %v61, %v60
  %vm70 = vcmask 523264
  %v72 = vsel %vm70, %v44, 0
  %v75 = vsel %vm70, %v45, 0
  %77 = vmatprep.subr.bf16.mxu0 0
  %78 = vmatpush1.bf16.msra.mxu0 %v62
  %79 = vmatprep.subr.bf16.mxu0 0
  %80 = vmatpush1.bf16.msra.mxu0 %v63
  %81 = vmatprep.subr.bf16.mxu0 0
  %82 = vmatpush1.bf16.msra.mxu0 %v64
  %83 = vmatprep.subr.bf16.mxu0 0
  %84 = vmatpush1.bf16.msra.mxu0 %v65
  %85 = vmatprep.subr.bf16.mxu0 0
  %86 = vmatpush1.bf16.msra.mxu0 0
  %87 = vmatprep.subr.bf16.mxu0 0
  %88 = vmatpush1.bf16.msra.mxu0 0
  %89 = vmatprep.subr.bf16.mxu0 0
  %90 = vmatpush1.bf16.msra.mxu0 0
  %91 = vmatprep.subr.bf16.mxu0 0
  %92 = vmatpush1.bf16.msra.mxu0 0
  %93 = vmatprep.subr.bf16.mxu0 0
  %94 = vmatpush1.bf16.msra.mxu0 0
  %95 = vmatprep.subr.bf16.mxu0 0
  %96 = vmatpush1.bf16.msra.mxu0 0
  %97 = vmatprep.subr.bf16.mxu0 0
  %98 = vmatpush1.bf16.msra.mxu0 0
  %99 = vmatprep.subr.bf16.mxu0 0
  %100 = vmatpush1.bf16.msra.mxu0 0
  %101 = vmatprep.subr.bf16.mxu0 0
  %102 = vmatpush1.bf16.msra.mxu0 0
  %103 = vmatprep.subr.bf16.mxu0 0
  %104 = vmatpush1.bf16.msra.mxu0 0
  %105 = vmatprep.subr.bf16.mxu0 0
  %106 = vmatpush1.bf16.msra.mxu0 0
  %107 = vmatprep.subr.bf16.mxu0 0
  %108 = vmatpush1.bf16.msra.mxu0 0
  %109 = vmatprep.mubr.bf16.mxu0 0
  %110 = vmatmul.mubr.bf16.gmra.mrb[0].mxu0 %v72
  %v111 = vpop.f32.mrb[0].mxu0
  %v112 = vadd.f32 0.0, %v111
  %v113 = vpop.f32.mrb[0].mxu0
  %v114 = vpop.f32.mrb[0].mxu0
  %v115 = vadd.f32 0.0, %v114
  %v116 = vpop.f32.mrb[0].mxu0
  %117 = vmatprep.mubr.bf16.mxu0 0
  %118 = vmatmul.mubr.bf16.gmra.mrb[0].mxu0 %v75
  %v119 = vpop.f32.mrb[0].mxu0
  %v120 = vadd.f32 0.0, %v119
  %v121 = vpop.f32.mrb[0].mxu0
  %v122 = vpop.f32.mrb[0].mxu0
  %v123 = vadd.f32 0.0, %v122
  %v124 = vpop.f32.mrb[0].mxu0
  %125 = vdwg.mxu0
  %vm126 = vcmask 64512
  %127 = vst.msk [vmem:[#allocation2] sm:$0xff] %vm126, %v112
  %128 = vst.msk [vmem:[#allocation2 + $0x8] sm:$0xff] %vm126, %v115
  %129 = vst.msk [vmem:[#allocation2 + $0x10] sm:$0xff] %vm126, %v120
  %130 = vst.msk [vmem:[#allocation2 + $0x18] sm:$0xff] %vm126, %v123
  %v131 = vld [vmem:[#allocation3] sm:$0x1]
  %v132 = vsel %vm126, %v112, 0.0
  %v133 = vsel %vm126, %v115, 0.0
  %v134 = vadd.f32 %v132, %v133
  %v135 = vsel %vm126, %v120, 0.0
  %v136 = vadd.f32 %v134, %v135
  %v137 = vsel %vm126, %v123, 0.0
  %v138 = vadd.f32 %v136, %v137
  %v139 = vrot.slane %v138, 4
  %v140 = vadd.f32 %v138, %v139
  %v141 = vrot.slane %v140, 2
  %v142 = vadd.f32 %v140, %v141
  %v143 = vrot.slane %v142, 1
  %v144 = vadd.f32 %v142, %v143
  %v145 = vadd.f32 %v131, %v144
  %vm146 = vcmask 57344
  %147 = vst.msk [vmem:[#allocation3] sm:$0x1] %vm146, %v145
  // Predicated region
  $region22: #{encoder_forward.6} parent=0 // pred_check
    %p148 = pneg %p18
  $region23: #{encoder_forward.6} parent=0 // pred_check_branch
    %150 = sbr.rel (%p148) target = $region25
  $region24: #{encoder_forward.6} parent=0 // pred_region
    %v151 = vld [vmem:[#allocation3] sm:$0x1]
    %v152 = vmul.f32 %v151, 0.03125
    %v153 = vld [vmem:[#allocation2] sm:$0xff]
    %v154 = vld [vmem:[#allocation2 + $0x8] sm:$0xff]
    %v155 = vld [vmem:[#allocation2 + $0x10] sm:$0xff]
    %v156 = vld [vmem:[#allocation2 + $0x18] sm:$0xff]
    %v158 = vlaneseq
    %v159 = vshrl.u32 %v158, 7
    %v160 = vsub.s32 0, %v159
    %v161 = vrot.slane %v152, %v160
    %v163 = vsub.f32 %v153, %v161
    %v164 = vsub.f32 %v154, %v161
    %v165 = vsub.f32 %v155, %v161
    %v166 = vsub.f32 %v156, %v161
    %v167 = vmul.f32 %v163, %v163
    %v168 = vmul.f32 %v164, %v164
    %v169 = vmul.f32 %v165, %v165
    %v170 = vmul.f32 %v166, %v166
    %v171 = vsel %vm126, %v167, 0.0
    %v172 = vsel %vm126, %v168, 0.0
    %v173 = vadd.f32 %v171, %v172
    %v174 = vsel %vm126, %v169, 0.0
    %v175 = vadd.f32 %v173, %v174
    %v176 = vsel %vm126, %v170, 0.0
    %v177 = vadd.f32 %v175, %v176
    %v178 = vrot.slane %v177, 4
    %v179 = vadd.f32 %v177, %v178
    %v180 = vrot.slane %v179, 2
    %v181 = vadd.f32 %v179, %v180
    %v182 = vrot.slane %v181, 1
    %v183 = vadd.f32 %v181, %v182
    %v184 = vmul.f32 %v152, %v152
    %v185 = vmul.f32 %v184, 0.0
    %v186 = vsub.f32 %v183, %v185
    %v187 = vmul.f32 %v186, 0.03125
    %v188 = vmax.f32 %v187, 0.0
    %v189 = vadd.f32 %v188, 1e-05
    %v190 = vrsqrt.pop %v189
    %v191 = vld [vmem:[%s2] sm:$0x1]
    %v192 = vmul.f32 %v191, %v190
    %v193 = vld [vmem:[%s3] sm:$0x1]
    %v194 = vmul.f32 %v152, %v192
    %v195 = vsub.f32 %v193, %v194
    %v197 = vlaneseq
    %v198 = vshrl.u32 %v197, 7
    %v199 = vsub.s32 0, %v198
    %v200 = vrot.slane %v192, %v199
    %v202 = vmul.f32 %v153, %v200
    %v203 = vmul.f32 %v154, %v200
    %v204 = vmul.f32 %v155, %v200
    %v205 = vmul.f32 %v156, %v200
    %v207 = vlaneseq
    %v208 = vshrl.u32 %v207, 7
    %v209 = vsub.s32 0, %v208
    %v210 = vrot.slane %v195, %v209
    %v212 = vadd.f32 %v202, %v210
    %v213 = vadd.f32 %v203, %v210
    %v214 = vadd.f32 %v204, %v210
    %v215 = vadd.f32 %v205, %v210
    %v216 = vmax.f32 %v212, 0.0
    %v217 = vmax.f32 %v213, 0.0
    %v218 = vmax.f32 %v214, 0.0
    %v219 = vmax.f32 %v215, 0.0
    %v220 = vpack.c.bf16 %v217, %v216
    %v221 = vpack.c.bf16 %v219, %v218
    %v224 = vunpack.c.l.b16 %v220
    %v225 = vunpack.c.h.b16 %v220
    %v226 = vunpack.c.l.b16 %v221
    %v227 = vunpack.c.h.b16 %v221
    %v228 = vpack.c.b16 %v224, %v224
    %v229 = vpack.c.b16 %v225, %v225
    %v230 = vpack.c.b16 %v226, %v226
    %v231 = vpack.c.b16 %v227, %v227
    %vm236 = vcmask 60416
    %237 = vst.msk [vmem:[%s4] sm:$0xf] %vm236, %v228
    %238 = vst.msk [vmem:[%s4 + $0x4] sm:$0xf] %vm236, %v229
    %239 = vst.msk [vmem:[%s4 + $0x8] sm:$0xf] %vm236, %v230
    %240 = vst.msk [vmem:[%s4 + $0xc] sm:$0xf] %vm236, %v231
  $region25: #{encoder_forward.6} parent=0 // pred_fallthru
    _
  // Predicated region
  $region26: #{encoder_forward.6} parent=0 // pred_check
    _
  $region27: #{encoder_forward.6} parent=0 // pred_check_branch
    %242 = sbr.rel (0) target = $region29
  $region28: #{encoder_forward.6} parent=0 // pred_region
    _
  $region29: #{encoder_forward.6} parent=0 // pred_fallthru
    _
  // Predicated region
  $region30: #{encoder_forward.6} parent=0 // pred_check
    _
  $region31: #{encoder_forward.6} parent=0 // pred_check_branch
    %244 = sbr.rel (0) target = $region33
  $region32: #{encoder_forward.6} parent=0 // pred_region
    _
  $region33: #{encoder_forward.6} parent=0 // pred_fallthru
    _

// kernel: encoder_forward.7
$region0: #{encoder_forward.7}
  #allocation0 [shape = 'u32[]', space=smem, size = 0x4, offset = 0x4, fixed_abs, tag = 'smem constant byte address 0x4 - core index']
  #allocation1 [shape = 'u32[144,128]{1,0:T(1,128)}', space=vmem, size = 0x12000, scoped, tag = 'internal scratch']
  #allocation2 [shape = 'f32[32,16]{1,0:T(8,128)}', space=vmem, size = 0x4000, scoped, tag = 'scratch operand']
  #allocation3 [shape = 'f32[1,16]{1,0:T(1,128)}', space=vmem, size = 0x200, scoped, tag = 'scratch operand']
  %s0 = inlined_call_operand.vmem [shape: bf16[32,72], index: 0, kind: input, shape index: {}]
  %s1 = inlined_call_operand.vmem [shape: bf16[72,16], index: 1, kind: input, shape index: {}]
  %s2 = inlined_call_operand.vmem [shape: f32[1,16], index: 2, kind: input, shape index: {}]
  %s3 = inlined_call_operand.vmem [shape: f32[1,16], index: 3, kind: input, shape index: {}]
  %s4 = inlined_call_operand.vmem [shape: bf16[32,16], index: 4, kind: output, shape index: {}]
  %s5 = sld [smem:[#allocation0]]
  $region34: #{encoder_forward.7} parent=0
    _
  %s7 = ssub.s32 1, %s5
  %s8 = scalar_select 0, %s7, %s5
  // Predicated region
  $region2: #{encoder_forward.7} parent=0 // pred_check
    _
  $region3: #{encoder_forward.7} parent=0 // pred_check_branch
    %10 = sbr.rel (0) target = $region5
  $region4: #{encoder_forward.7} parent=0 // pred_region
    _
  $region5: #{encoder_forward.7} parent=0 // pred_fallthru
    _
  // Predicated region
  $region6: #{encoder_forward.7} parent=0 // pred_check
    _
  $region7: #{encoder_forward.7} parent=0 // pred_check_branch
    %12 = sbr.rel (0) target = $region9
  $region8: #{encoder_forward.7} parent=0 // pred_region
    _
  $region9: #{encoder_forward.7} parent=0 // pred_fallthru
    _
  // Predicated region
  $region10: #{encoder_forward.7} parent=0 // pred_check
    _
  $region11: #{encoder_forward.7} parent=0 // pred_check_branch
    %14 = sbr.rel (0) target = $region13
  $region12: #{encoder_forward.7} parent=0 // pred_region
    _
  $region13: #{encoder_forward.7} parent=0 // pred_fallthru
    _
  // Predicated region
  $region14: #{encoder_forward.7} parent=0 // pred_check
    _
  $region15: #{encoder_forward.7} parent=0 // pred_check_branch
    %16 = sbr.rel (0) target = $region17
  $region16: #{encoder_forward.7} parent=0 // pred_region
    _
  $region17: #{encoder_forward.7} parent=0 // pred_fallthru
    _
  %p18 = scmp.eq.s32.totalorder 0, 0
  // Predicated region
  $region18: #{encoder_forward.7} parent=0 // pred_check
    %p19 = pneg %p18
  $region19: #{encoder_forward.7} parent=0 // pred_check_branch
    %21 = sbr.rel (%p19) target = $region21
  $region20: #{encoder_forward.7} parent=0 // pred_region
    %vm22 = vcmask 122880
    %23 = vst.msk [vmem:[#allocation3] sm:$0x1] %vm22, 0.0
  $region21: #{encoder_forward.7} parent=0 // pred_fallthru
    _
  %v24 = vld [vmem:[%s0] sm:$0xf]
  %v25 = vld [vmem:[%s0 + $0x4] sm:$0xf]
  %v26 = vld [vmem:[%s0 + $0x8] sm:$0xf]
  %v27 = vld [vmem:[%s0 + $0xc] sm:$0xf]
  %v28 = vld [vmem:[%s1] sm:$0xf]
  %v29 = vld [vmem:[%s1 + $0x4] sm:$0xf]
  %v30 = vld [vmem:[%s1 + $0x8] sm:$0xf]
  %v31 = vld [vmem:[%s1 + $0xc] sm:$0xf]
  %v32 = vld [vmem:[%s1 + $0x10] sm:$0xf]
  %v33 = vld [vmem:[%s1 + $0x14] sm:$0xf]
  %v34 = vld [vmem:[%s1 + $0x18] sm:$0xf]
  %v35 = vld [vmem:[%s1 + $0x1c] sm:$0xf]
  %v36 = vld [vmem:[%s1 + $0x20] sm:$0xf]
  %v41 = vunpack.c.l.b16 %v24
  %v42 = vunpack.c.l.b16 %v25
  %v43 = vunpack.c.l.b16 %v26
  %v44 = vunpack.c.l.b16 %v27
  %v45 = vpack.c.b16 %v42, %v41
  %v46 = vpack.c.b16 %v44, %v43
  %v56 = vunpack.c.l.b16 %v28
  %v57 = vunpack.c.l.b16 %v29
  %v58 = vunpack.c.l.b16 %v30
  %v59 = vunpack.c.l.b16 %v31
  %v60 = vunpack.c.l.b16 %v32
  %v61 = vunpack.c.l.b16 %v33
  %v62 = vunpack.c.l.b16 %v34
  %v63 = vunpack.c.l.b16 %v35
  %v64 = vunpack.c.l.b16 %v36
  %v65 = vpack.c.b16 %v57, %v56
  %v66 = vpack.c.b16 %v59, %v58
  %v67 = vpack.c.b16 %v61, %v60
  %v68 = vpack.c.b16 %v63, %v62
  %v69 = vpack.c.b16 %v64, %v64
  %vm74 = vcmask 588800
  %v76 = vsel %vm74, %v45, 0
  %v79 = vsel %vm74, %v46, 0
  %vm81 = vcmask 1043456
  %v83 = vsel %vm81, %v69, 0
  %85 = vmatprep.subr.bf16.mxu0 0
  %86 = vmatpush1.bf16.msra.mxu0 %v65
  %87 = vmatprep.subr.bf16.mxu0 0
  %88 = vmatpush1.bf16.msra.mxu0 %v66
  %89 = vmatprep.subr.bf16.mxu0 0
  %90 = vmatpush1.bf16.msra.mxu0 %v67
  %91 = vmatprep.subr.bf16.mxu0 0
  %92 = vmatpush1.bf16.msra.mxu0 %v68
  %93 = vmatprep.subr.bf16.mxu0 0
  %94 = vmatpush1.bf16.msra.mxu0 %v83
  %95 = vmatprep.subr.bf16.mxu0 0
  %96 = vmatpush1.bf16.msra.mxu0 0
  %97 = vmatprep.subr.bf16.mxu0 0
  %98 = vmatpush1.bf16.msra.mxu0 0
  %99 = vmatprep.subr.bf16.mxu0 0
  %100 = vmatpush1.bf16.msra.mxu0 0
  %101 = vmatprep.subr.bf16.mxu0 0
  %102 = vmatpush1.bf16.msra.mxu0 0
  %103 = vmatprep.subr.bf16.mxu0 0
  %104 = vmatpush1.bf16.msra.mxu0 0
  %105 = vmatprep.subr.bf16.mxu0 0
  %106 = vmatpush1.bf16.msra.mxu0 0
  %107 = vmatprep.subr.bf16.mxu0 0
  %108 = vmatpush1.bf16.msra.mxu0 0
  %109 = vmatprep.subr.bf16.mxu0 0
  %110 = vmatpush1.bf16.msra.mxu0 0
  %111 = vmatprep.subr.bf16.mxu0 0
  %112 = vmatpush1.bf16.msra.mxu0 0
  %113 = vmatprep.subr.bf16.mxu0 0
  %114 = vmatpush1.bf16.msra.mxu0 0
  %115 = vmatprep.subr.bf16.mxu0 0
  %116 = vmatpush1.bf16.msra.mxu0 0
  %117 = vmatprep.mubr.bf16.mxu0 0
  %118 = vmatmul.mubr.bf16.gmra.mrb[0].mxu0 %v76
  %v119 = vpop.f32.mrb[0].mxu0
  %v120 = vadd.f32 0.0, %v119
  %v121 = vpop.f32.mrb[0].mxu0
  %v122 = vpop.f32.mrb[0].mxu0
  %v123 = vadd.f32 0.0, %v122
  %v124 = vpop.f32.mrb[0].mxu0
  %125 = vmatprep.mubr.bf16.mxu0 0
  %126 = vmatmul.mubr.bf16.gmra.mrb[0].mxu0 %v79
  %v127 = vpop.f32.mrb[0].mxu0
  %v128 = vadd.f32 0.0, %v127
  %v129 = vpop.f32.mrb[0].mxu0
  %v130 = vpop.f32.mrb[0].mxu0
  %v131 = vadd.f32 0.0, %v130
  %v132 = vpop.f32.mrb[0].mxu0
  %133 = vdwg.mxu0
  %vm134 = vcmask 130048
  %135 = vst.msk [vmem:[#allocation2] sm:$0xff] %vm134, %v120
  %136 = vst.msk [vmem:[#allocation2 + $0x8] sm:$0xff] %vm134, %v123
  %137 = vst.msk [vmem:[#allocation2 + $0x10] sm:$0xff] %vm134, %v128
  %138 = vst.msk [vmem:[#allocation2 + $0x18] sm:$0xff] %vm134, %v131
  %v139 = vld [vmem:[#allocation3] sm:$0x1]
  %v140 = vsel %vm134, %v120, 0.0
  %v141 = vsel %vm134, %v123, 0.0
  %v142 = vadd.f32 %v140, %v141
  %v143 = vsel %vm134, %v128, 0.0
  %v144 = vadd.f32 %v142, %v143
  %v145 = vsel %vm134, %v131, 0.0
  %v146 = vadd.f32 %v144, %v145
  %v147 = vrot.slane %v146, 4
  %v148 = vadd.f32 %v146, %v147
  %v149 = vrot.slane %v148, 2
  %v150 = vadd.f32 %v148, %v149
  %v151 = vrot.slane %v150, 1
  %v152 = vadd.f32 %v150, %v151
  %v153 = vadd.f32 %v139, %v152
  %vm154 = vcmask 122880
  %155 = vst.msk [vmem:[#allocation3] sm:$0x1] %vm154, %v153
  // Predicated region
  $region22: #{encoder_forward.7} parent=0 // pred_check
    %p156 = pneg %p18
  $region23: #{encoder_forward.7} parent=0 // pred_check_branch
    %158 = sbr.rel (%p156) target = $region25
  $region24: #{encoder_forward.7} parent=0 // pred_region
    %v159 = vld [vmem:[#allocation3] sm:$0x1]
    %v160 = vmul.f32 %v159, 0.03125
    %v161 = vld [vmem:[#allocation2] sm:$0xff]
    %v162 = vld [vmem:[#allocation2 + $0x8] sm:$0xff]
    %v163 = vld [vmem:[#allocation2 + $0x10] sm:$0xff]
    %v164 = vld [vmem:[#allocation2 + $0x18] sm:$0xff]
    %v166 = vlaneseq
    %v167 = vshrl.u32 %v166, 7
    %v168 = vsub.s32 0, %v167
    %v169 = vrot.slane %v160, %v168
    %v171 = vsub.f32 %v161, %v169
    %v172 = vsub.f32 %v162, %v169
    %v173 = vsub.f32 %v163, %v169
    %v174 = vsub.f32 %v164, %v169
    %v175 = vmul.f32 %v171, %v171
    %v176 = vmul.f32 %v172, %v172
    %v177 = vmul.f32 %v173, %v173
    %v178 = vmul.f32 %v174, %v174
    %v179 = vsel %vm134, %v175, 0.0
    %v180 = vsel %vm134, %v176, 0.0
    %v181 = vadd.f32 %v179, %v180
    %v182 = vsel %vm134, %v177, 0.0
    %v183 = vadd.f32 %v181, %v182
    %v184 = vsel %vm134, %v178, 0.0
    %v185 = vadd.f32 %v183, %v184
    %v186 = vrot.slane %v185, 4
    %v187 = vadd.f32 %v185, %v186
    %v188 = vrot.slane %v187, 2
    %v189 = vadd.f32 %v187, %v188
    %v190 = vrot.slane %v189, 1
    %v191 = vadd.f32 %v189, %v190
    %v192 = vmul.f32 %v160, %v160
    %v193 = vmul.f32 %v192, 0.0
    %v194 = vsub.f32 %v191, %v193
    %v195 = vmul.f32 %v194, 0.03125
    %v196 = vmax.f32 %v195, 0.0
    %v197 = vadd.f32 %v196, 1e-05
    %v198 = vrsqrt.pop %v197
    %v199 = vld [vmem:[%s2] sm:$0x1]
    %v200 = vmul.f32 %v199, %v198
    %v201 = vld [vmem:[%s3] sm:$0x1]
    %v202 = vmul.f32 %v160, %v200
    %v203 = vsub.f32 %v201, %v202
    %v205 = vlaneseq
    %v206 = vshrl.u32 %v205, 7
    %v207 = vsub.s32 0, %v206
    %v208 = vrot.slane %v200, %v207
    %v210 = vmul.f32 %v161, %v208
    %v211 = vmul.f32 %v162, %v208
    %v212 = vmul.f32 %v163, %v208
    %v213 = vmul.f32 %v164, %v208
    %v215 = vlaneseq
    %v216 = vshrl.u32 %v215, 7
    %v217 = vsub.s32 0, %v216
    %v218 = vrot.slane %v203, %v217
    %v220 = vadd.f32 %v210, %v218
    %v221 = vadd.f32 %v211, %v218
    %v222 = vadd.f32 %v212, %v218
    %v223 = vadd.f32 %v213, %v218
    %v224 = vmax.f32 %v220, 0.0
    %v225 = vmax.f32 %v221, 0.0
    %v226 = vmax.f32 %v222, 0.0
    %v227 = vmax.f32 %v223, 0.0
    %v228 = vpack.c.bf16 %v225, %v224
    %v229 = vpack.c.bf16 %v227, %v226
    %v232 = vunpack.c.l.b16 %v228
    %v233 = vunpack.c.h.b16 %v228
    %v234 = vunpack.c.l.b16 %v229
    %v235 = vunpack.c.h.b16 %v229
    %v236 = vpack.c.b16 %v232, %v232
    %v237 = vpack.c.b16 %v233, %v233
    %v238 = vpack.c.b16 %v234, %v234
    %v239 = vpack.c.b16 %v235, %v235
    %vm244 = vcmask 125952
    %245 = vst.msk [vmem:[%s4] sm:$0xf] %vm244, %v236
    %246 = vst.msk [vmem:[%s4 + $0x4] sm:$0xf] %vm244, %v237
    %247 = vst.msk [vmem:[%s4 + $0x8] sm:$0xf] %vm244, %v238
    %248 = vst.msk [vmem:[%s4 + $0xc] sm:$0xf] %vm244, %v239
  $region25: #{encoder_forward.7} parent=0 // pred_fallthru
    _
  // Predicated region
  $region26: #{encoder_forward.7} parent=0 // pred_check
    _
  $region27: #{encoder_forward.7} parent=0 // pred_check_branch
    %250 = sbr.rel (0) target = $region29
  $region28: #{encoder_forward.7} parent=0 // pred_region
    _
  $region29: #{encoder_forward.7} parent=0 // pred_fallthru
    _
  // Predicated region
  $region30: #{encoder_forward.7} parent=0 // pred_check
    _
  $region31: #{encoder_forward.7} parent=0 // pred_check_branch
    %252 = sbr.rel (0) target = $region33
  $region32: #{encoder_forward.7} parent=0 // pred_region
    _
  $region33: #{encoder_forward.7} parent=0 // pred_fallthru
    _

// kernel: encoder_forward.8
$region0: #{encoder_forward.8}
  #allocation0 [shape = 'u32[]', space=smem, size = 0x4, offset = 0x4, fixed_abs, tag = 'smem constant byte address 0x4 - core index']
  #allocation1 [shape = 'u32[144,128]{1,0:T(1,128)}', space=vmem, size = 0x12000, scoped, tag = 'internal scratch']
  #allocation2 [shape = 'f32[50,32]{1,0:T(8,128)}', space=vmem, size = 0x7000, scoped, tag = 'scratch operand']
  #allocation3 [shape = 'f32[1,32]{1,0:T(1,128)}', space=vmem, size = 0x200, scoped, tag = 'scratch operand']
  %s0 = inlined_call_operand.vmem [shape: bf16[50,64], index: 0, kind: input, shape index: {}]
  %s1 = inlined_call_operand.vmem [shape: bf16[64,32], index: 1, kind: input, shape index: {}]
  %s2 = inlined_call_operand.vmem [shape: f32[1,32], index: 2, kind: input, shape index: {}]
  %s3 = inlined_call_operand.vmem [shape: f32[1,32], index: 3, kind: input, shape index: {}]
  %s4 = inlined_call_operand.vmem [shape: bf16[50,32], index: 4, kind: output, shape index: {}]
  %s5 = sld [smem:[#allocation0]]
  $region34: #{encoder_forward.8} parent=0
    _
  %s7 = ssub.s32 1, %s5
  %s8 = scalar_select 0, %s7, %s5
  // Predicated region
  $region2: #{encoder_forward.8} parent=0 // pred_check
    _
  $region3: #{encoder_forward.8} parent=0 // pred_check_branch
    %10 = sbr.rel (0) target = $region5
  $region4: #{encoder_forward.8} parent=0 // pred_region
    _
  $region5: #{encoder_forward.8} parent=0 // pred_fallthru
    _
  // Predicated region
  $region6: #{encoder_forward.8} parent=0 // pred_check
    _
  $region7: #{encoder_forward.8} parent=0 // pred_check_branch
    %12 = sbr.rel (0) target = $region9
  $region8: #{encoder_forward.8} parent=0 // pred_region
    _
  $region9: #{encoder_forward.8} parent=0 // pred_fallthru
    _
  // Predicated region
  $region10: #{encoder_forward.8} parent=0 // pred_check
    _
  $region11: #{encoder_forward.8} parent=0 // pred_check_branch
    %14 = sbr.rel (0) target = $region13
  $region12: #{encoder_forward.8} parent=0 // pred_region
    _
  $region13: #{encoder_forward.8} parent=0 // pred_fallthru
    _
  // Predicated region
  $region14: #{encoder_forward.8} parent=0 // pred_check
    _
  $region15: #{encoder_forward.8} parent=0 // pred_check_branch
    %16 = sbr.rel (0) target = $region17
  $region16: #{encoder_forward.8} parent=0 // pred_region
    _
  $region17: #{encoder_forward.8} parent=0 // pred_fallthru
    _
  %p18 = scmp.eq.s32.totalorder 0, 0
  // Predicated region
  $region18: #{encoder_forward.8} parent=0 // pred_check
    %p19 = pneg %p18
  $region19: #{encoder_forward.8} parent=0 // pred_check_branch
    %21 = sbr.rel (%p19) target = $region21
  $region20: #{encoder_forward.8} parent=0 // pred_region
    %vm22 = vcmask 253952
    %23 = vst.msk [vmem:[#allocation3] sm:$0x1] %vm22, 0.0
  $region21: #{encoder_forward.8} parent=0 // pred_fallthru
    _
  %v24 = vld [vmem:[%s0] sm:$0xf]
  %v25 = vld [vmem:[%s0 + $0x4] sm:$0xf]
  %v26 = vld [vmem:[%s0 + $0x8] sm:$0xf]
  %v27 = vld [vmem:[%s0 + $0xc] sm:$0xf]
  %v28 = vld [vmem:[%s0 + $0x10] sm:$0xf]
  %v29 = vld [vmem:[%s0 + $0x14] sm:$0xf]
  %v30 = vld [vmem:[%s0 + $0x18] sm:$0x1]
  %v31 = vld [vmem:[%s1] sm:$0xf]
  %v32 = vld [vmem:[%s1 + $0x4] sm:$0xf]
  %v33 = vld [vmem:[%s1 + $0x8] sm:$0xf]
  %v34 = vld [vmem:[%s1 + $0xc] sm:$0xf]
  %v35 = vld [vmem:[%s1 + $0x10] sm:$0xf]
  %v36 = vld [vmem:[%s1 + $0x14] sm:$0xf]
  %v37 = vld [vmem:[%s1 + $0x18] sm:$0xf]
  %v38 = vld [vmem:[%s1 + $0x1c] sm:$0xf]
  %v46 = vunpack.c.l.b16 %v24
  %v47 = vunpack.c.l.b16 %v25
  %v48 = vunpack.c.l.b16 %v26
  %v49 = vunpack.c.l.b16 %v27
  %v50 = vunpack.c.l.b16 %v28
  %v51 = vunpack.c.l.b16 %v29
  %v52 = vunpack.c.l.b16 %v30
  %v53 = vpack.c.b16 %v47, %v46
  %v54 = vpack.c.b16 %v49, %v48
  %v55 = vpack.c.b16 %v51, %v50
  %v56 = vpack.c.b16 %v52, %v52
  %v65 = vunpack.c.l.b16 %v31
  %v66 = vunpack.c.l.b16 %v32
  %v67 = vunpack.c.l.b16 %v33
  %v68 = vunpack.c.l.b16 %v34
  %v69 = vunpack.c.l.b16 %v35
  %v70 = vunpack.c.l.b16 %v36
  %v71 = vunpack.c.l.b16 %v37
  %v72 = vunpack.c.l.b16 %v38
  %v73 = vpack.c.b16 %v66, %v65
  %v74 = vpack.c.b16 %v68, %v67
  %v75 = vpack.c.b16 %v70, %v69
  %v76 = vpack.c.b16 %v72, %v71
  %vm81 = vcmask 523264
  %v83 = vsel %vm81, %v53, 0
  %v86 = vsel %vm81, %v54, 0
  %v89 = vsel %vm81, %v55, 0
  %v92 = vsel %vm81, %v56, 0
  %94 = vmatprep.subr.bf16.mxu0 0
  %95 = vmatpush1.bf16.msra.mxu0 %v73
  %96 = vmatprep.subr.bf16.mxu0 0
  %97 = vmatpush1.bf16.msra.mxu0 %v74
  %98 = vmatprep.subr.bf16.mxu0 0
  %99 = vmatpush1.bf16.msra.mxu0 %v75
  %100 = vmatprep.subr.bf16.mxu0 0
  %101 = vmatpush1.bf16.msra.mxu0 %v76
  %102 = vmatprep.subr.bf16.mxu0 0
  %103 = vmatpush1.bf16.msra.mxu0 0
  %104 = vmatprep.subr.bf16.mxu0 0
  %105 = vmatpush1.bf16.msra.mxu0 0
  %106 = vmatprep.subr.bf16.mxu0 0
  %107 = vmatpush1.bf16.msra.mxu0 0
  %108 = vmatprep.subr.bf16.mxu0 0
  %109 = vmatpush1.bf16.msra.mxu0 0
  %110 = vmatprep.subr.bf16.mxu0 0
  %111 = vmatpush1.bf16.msra.mxu0 0
  %112 = vmatprep.subr.bf16.mxu0 0
  %113 = vmatpush1.bf16.msra.mxu0 0
  %114 = vmatprep.subr.bf16.mxu0 0
  %115 = vmatpush1.bf16.msra.mxu0 0
  %116 = vmatprep.subr.bf16.mxu0 0
  %117 = vmatpush1.bf16.msra.mxu0 0
  %118 = vmatprep.subr.bf16.mxu0 0
  %119 = vmatpush1.bf16.msra.mxu0 0
  %120 = vmatprep.subr.bf16.mxu0 0
  %121 = vmatpush1.bf16.msra.mxu0 0
  %122 = vmatprep.subr.bf16.mxu0 0
  %123 = vmatpush1.bf16.msra.mxu0 0
  %124 = vmatprep.subr.bf16.mxu0 0
  %125 = vmatpush1.bf16.msra.mxu0 0
  %126 = vmatprep.mubr.bf16.mxu0 0
  %127 = vmatmul.mubr.bf16.gmra.mrb[0].mxu0 %v83
  %v128 = vpop.f32.mrb[0].mxu0
  %v129 = vadd.f32 0.0, %v128
  %v130 = vpop.f32.mrb[0].mxu0
  %v131 = vpop.f32.mrb[0].mxu0
  %v132 = vadd.f32 0.0, %v131
  %v133 = vpop.f32.mrb[0].mxu0
  %134 = vmatprep.mubr.bf16.mxu0 0
  %135 = vmatmul.mubr.bf16.gmra.mrb[0].mxu0 %v86
  %v136 = vpop.f32.mrb[0].mxu0
  %v137 = vadd.f32 0.0, %v136
  %v138 = vpop.f32.mrb[0].mxu0
  %v139 = vpop.f32.mrb[0].mxu0
  %v140 = vadd.f32 0.0, %v139
  %v141 = vpop.f32.mrb[0].mxu0
  %142 = vmatprep.mubr.bf16.mxu0 0
  %143 = vmatmul.mubr.bf16.gmra.mrb[0].mxu0 %v89
  %v144 = vpop.f32.mrb[0].mxu0
  %v145 = vadd.f32 0.0, %v144
  %v146 = vpop.f32.mrb[0].mxu0
  %v147 = vpop.f32.mrb[0].mxu0
  %v148 = vadd.f32 0.0, %v147
  %v149 = vpop.f32.mrb[0].mxu0
  %150 = vmatprep.mubr.bf16.mxu0 0
  %151 = vmatmul.mubr.bf16.gmra.mrb[0].mxu0 %v92
  %v152 = vpop.f32.mrb[0].mxu0
  %v153 = vadd.f32 0.0, %v152
  %v154 = vpop.f32.mrb[0].mxu0
  %v155 = vpop.f32.mrb[0].mxu0
  %v156 = vpop.f32.mrb[0].mxu0
  %157 = vdwg.mxu0
  %vm158 = vcmask 261120
  %159 = vst.msk [vmem:[#allocation2] sm:$0xff] %vm158, %v129
  %160 = vst.msk [vmem:[#allocation2 + $0x8] sm:$0xff] %vm158, %v132
  %161 = vst.msk [vmem:[#allocation2 + $0x10] sm:$0xff] %vm158, %v137
  %162 = vst.msk [vmem:[#allocation2 + $0x18] sm:$0xff] %vm158, %v140
  %163 = vst.msk [vmem:[#allocation2 + $0x20] sm:$0xff] %vm158, %v145
  %164 = vst.msk [vmem:[#allocation2 + $0x28] sm:$0xff] %vm158, %v148
  %vm165 = vcmask 254976
  %166 = vst.msk [vmem:[#allocation2 + $0x30] sm:$0x3] %vm165, %v153
  %v167 = vld [vmem:[#allocation3] sm:$0x1]
  %v168 = vsel %vm158, %v129, 0.0
  %v169 = vsel %vm158, %v132, 0.0
  %v170 = vadd.f32 %v168, %v169
  %v171 = vsel %vm158, %v137, 0.0
  %v172 = vadd.f32 %v170, %v171
  %v173 = vsel %vm158, %v140, 0.0
  %v174 = vadd.f32 %v172, %v173
  %v175 = vsel %vm158, %v145, 0.0
  %v176 = vadd.f32 %v174, %v175
  %v177 = vsel %vm158, %v148, 0.0
  %v178 = vadd.f32 %v176, %v177
  %v179 = vsel %vm165, %v153, 0.0
  %v180 = vadd.f32 %v178, %v179
  %v181 = vrot.slane %v180, 4
  %v182 = vadd.f32 %v180, %v181
  %v183 = vrot.slane %v182, 2
  %v184 = vadd.f32 %v182, %v183
  %v185 = vrot.slane %v184, 1
  %v186 = vadd.f32 %v184, %v185
  %v187 = vadd.f32 %v167, %v186
  %vm188 = vcmask 253952
  %189 = vst.msk [vmem:[#allocation3] sm:$0x1] %vm188, %v187
  // Predicated region
  $region22: #{encoder_forward.8} parent=0 // pred_check
    %p190 = pneg %p18
  $region23: #{encoder_forward.8} parent=0 // pred_check_branch
    %192 = sbr.rel (%p190) target = $region25
  $region24: #{encoder_forward.8} parent=0 // pred_region
    %v193 = vld [vmem:[#allocation3] sm:$0x1]
    %v194 = vmul.f32 %v193, 0.02
    %v195 = vld [vmem:[#allocation2] sm:$0xff]
    %v196 = vld [vmem:[#allocation2 + $0x8] sm:$0xff]
    %v197 = vld [vmem:[#allocation2 + $0x10] sm:$0xff]
    %v198 = vld [vmem:[#allocation2 + $0x18] sm:$0xff]
    %v199 = vld [vmem:[#allocation2 + $0x20] sm:$0xff]
    %v200 = vld [vmem:[#allocation2 + $0x28] sm:$0xff]
    %v201 = vld [vmem:[#allocation2 + $0x30] sm:$0x3]
    %v203 = vlaneseq
    %v204 = vshrl.u32 %v203, 7
    %v205 = vsub.s32 0, %v204
    %v206 = vrot.slane %v194, %v205
    %v208 = vsub.f32 %v195, %v206
    %v209 = vsub.f32 %v196, %v206
    %v210 = vsub.f32 %v197, %v206
    %v211 = vsub.f32 %v198, %v206
    %v212 = vsub.f32 %v199, %v206
    %v213 = vsub.f32 %v200, %v206
    %v214 = vsub.f32 %v201, %v206
    %v215 = vmul.f32 %v208, %v208
    %v216 = vmul.f32 %v209, %v209
    %v217 = vmul.f32 %v210, %v210
    %v218 = vmul.f32 %v211, %v211
    %v219 = vmul.f32 %v212, %v212
    %v220 = vmul.f32 %v213, %v213
    %v221 = vmul.f32 %v214, %v214
    %v222 = vsel %vm158, %v215, 0.0
    %v223 = vsel %vm158, %v216, 0.0
    %v224 = vadd.f32 %v222, %v223
    %v225 = vsel %vm158, %v217, 0.0
    %v226 = vadd.f32 %v224, %v225
    %v227 = vsel %vm158, %v218, 0.0
    %v228 = vadd.f32 %v226, %v227
    %v229 = vsel %vm158, %v219, 0.0
    %v230 = vadd.f32 %v228, %v229
    %v231 = vsel %vm158, %v220, 0.0
    %v232 = vadd.f32 %v230, %v231
    %v233 = vsel %vm165, %v221, 0.0
    %v234 = vadd.f32 %v232, %v233
    %v235 = vrot.slane %v234, 4
    %v236 = vadd.f32 %v234, %v235
    %v237 = vrot.slane %v236, 2
    %v238 = vadd.f32 %v236, %v237
    %v239 = vrot.slane %v238, 1
    %v240 = vadd.f32 %v238, %v239
    %v241 = vmul.f32 %v194, %v194
    %v242 = vmul.f32 %v241, 0.0
    %v243 = vsub.f32 %v240, %v242
    %v244 = vmul.f32 %v243, 0.02
    %v245 = vmax.f32 %v244, 0.0
    %v246 = vadd.f32 %v245, 1e-05
    %v247 = vrsqrt.pop %v246
    %v248 = vld [vmem:[%s2] sm:$0x1]
    %v249 = vmul.f32 %v248, %v247
    %v250 = vld [vmem:[%s3] sm:$0x1]
    %v251 = vmul.f32 %v194, %v249
    %v252 = vsub.f32 %v250, %v251
    %v254 = vlaneseq
    %v255 = vshrl.u32 %v254, 7
    %v256 = vsub.s32 0, %v255
    %v257 = vrot.slane %v249, %v256
    %v259 = vmul.f32 %v195, %v257
    %v260 = vmul.f32 %v196, %v257
    %v261 = vmul.f32 %v197, %v257
    %v262 = vmul.f32 %v198, %v257
    %v263 = vmul.f32 %v199, %v257
    %v264 = vmul.f32 %v200, %v257
    %v265 = vmul.f32 %v201, %v257
    %v267 = vlaneseq
    %v268 = vshrl.u32 %v267, 7
    %v269 = vsub.s32 0, %v268
    %v270 = vrot.slane %v252, %v269
    %v272 = vadd.f32 %v259, %v270
    %v273 = vadd.f32 %v260, %v270
    %v274 = vadd.f32 %v261, %v270
    %v275 = vadd.f32 %v262, %v270
    %v276 = vadd.f32 %v263, %v270
    %v277 = vadd.f32 %v264, %v270
    %v278 = vadd.f32 %v265, %v270
    %v279 = vmax.f32 %v272, 0.0
    %v280 = vmax.f32 %v273, 0.0
    %v281 = vmax.f32 %v274, 0.0
    %v282 = vmax.f32 %v275, 0.0
    %v283 = vmax.f32 %v276, 0.0
    %v284 = vmax.f32 %v277, 0.0
    %v285 = vmax.f32 %v278, 0.0
    %v286 = vpack.c.bf16 %v280, %v279
    %v287 = vpack.c.bf16 %v282, %v281
    %v288 = vpack.c.bf16 %v284, %v283
    %v289 = vpack.c.bf16 %v285, %v285
    %v294 = vunpack.c.l.b16 %v286
    %v295 = vunpack.c.h.b16 %v286
    %v296 = vunpack.c.l.b16 %v287
    %v297 = vunpack.c.h.b16 %v287
    %v298 = vunpack.c.l.b16 %v288
    %v299 = vunpack.c.h.b16 %v288
    %v300 = vunpack.c.l.b16 %v289
    %v301 = vpack.c.b16 %v294, %v294
    %v302 = vpack.c.b16 %v295, %v295
    %v303 = vpack.c.b16 %v296, %v296
    %v304 = vpack.c.b16 %v297, %v297
    %v305 = vpack.c.b16 %v298, %v298
    %v306 = vpack.c.b16 %v299, %v299
    %v307 = vpack.c.b16 %v300, %v300
    %vm315 = vcmask 257024
    %316 = vst.msk [vmem:[%s4] sm:$0xf] %vm315, %v301
    %317 = vst.msk [vmem:[%s4 + $0x4] sm:$0xf] %vm315, %v302
    %318 = vst.msk [vmem:[%s4 + $0x8] sm:$0xf] %vm315, %v303
    %319 = vst.msk [vmem:[%s4 + $0xc] sm:$0xf] %vm315, %v304
    %320 = vst.msk [vmem:[%s4 + $0x10] sm:$0xf] %vm315, %v305
    %321 = vst.msk [vmem:[%s4 + $0x14] sm:$0xf] %vm315, %v306
    %322 = vst.msk [vmem:[%s4 + $0x18] sm:$0x1] %vm188, %v307
  $region25: #{encoder_forward.8} parent=0 // pred_fallthru
    _
  // Predicated region
  $region26: #{encoder_forward.8} parent=0 // pred_check
    _
  $region27: #{encoder_forward.8} parent=0 // pred_check_branch
    %324 = sbr.rel (0) target = $region29
  $region28: #{encoder_forward.8} parent=0 // pred_region
    _
  $region29: #{encoder_forward.8} parent=0 // pred_fallthru
    _
  // Predicated region
  $region30: #{encoder_forward.8} parent=0 // pred_check
    _
  $region31: #{encoder_forward.8} parent=0 // pred_check_branch
    %326 = sbr.rel (0) target = $region33
  $region32: #{encoder_forward.8} parent=0 // pred_region
    _
  $region33: #{encoder_forward.8} parent=0 // pred_fallthru
    _

// kernel: encoder_forward.9
$region0: #{encoder_forward.9}
  #allocation0 [shape = 'u32[]', space=smem, size = 0x4, offset = 0x4, fixed_abs, tag = 'smem constant byte address 0x4 - core index']
  #allocation1 [shape = 'u32[144,128]{1,0:T(1,128)}', space=vmem, size = 0x12000, scoped, tag = 'internal scratch']
  #allocation2 [shape = 'f32[72,64]{1,0:T(8,128)}', space=vmem, size = 0x9000, scoped, tag = 'scratch operand']
  #allocation3 [shape = 'f32[1,64]{1,0:T(1,128)}', space=vmem, size = 0x200, scoped, tag = 'scratch operand']
  %s0 = inlined_call_operand.vmem [shape: bf16[72,128], index: 0, kind: input, shape index: {}]
  %s1 = inlined_call_operand.vmem [shape: bf16[128,64], index: 1, kind: input, shape index: {}]
  %s2 = inlined_call_operand.vmem [shape: f32[1,64], index: 2, kind: input, shape index: {}]
  %s3 = inlined_call_operand.vmem [shape: f32[1,64], index: 3, kind: input, shape index: {}]
  %s4 = inlined_call_operand.vmem [shape: f32[72,64], index: 4, kind: output, shape index: {}]
  %s5 = sld [smem:[#allocation0]]
  $region34: #{encoder_forward.9} parent=0
    _
  %s7 = ssub.s32 1, %s5
  %s8 = scalar_select 0, %s7, %s5
  // Predicated region
  $region2: #{encoder_forward.9} parent=0 // pred_check
    _
  $region3: #{encoder_forward.9} parent=0 // pred_check_branch
    %10 = sbr.rel (0) target = $region5
  $region4: #{encoder_forward.9} parent=0 // pred_region
    _
  $region5: #{encoder_forward.9} parent=0 // pred_fallthru
    _
  // Predicated region
  $region6: #{encoder_forward.9} parent=0 // pred_check
    _
  $region7: #{encoder_forward.9} parent=0 // pred_check_branch
    %12 = sbr.rel (0) target = $region9
  $region8: #{encoder_forward.9} parent=0 // pred_region
    _
  $region9: #{encoder_forward.9} parent=0 // pred_fallthru
    _
  // Predicated region
  $region10: #{encoder_forward.9} parent=0 // pred_check
    _
  $region11: #{encoder_forward.9} parent=0 // pred_check_branch
    %14 = sbr.rel (0) target = $region13
  $region12: #{encoder_forward.9} parent=0 // pred_region
    _
  $region13: #{encoder_forward.9} parent=0 // pred_fallthru
    _
  // Predicated region
  $region14: #{encoder_forward.9} parent=0 // pred_check
    _
  $region15: #{encoder_forward.9} parent=0 // pred_check_branch
    %16 = sbr.rel (0) target = $region17
  $region16: #{encoder_forward.9} parent=0 // pred_region
    _
  $region17: #{encoder_forward.9} parent=0 // pred_fallthru
    _
  %p18 = scmp.eq.s32.totalorder 0, 0
  // Predicated region
  $region18: #{encoder_forward.9} parent=0 // pred_check
    %p19 = pneg %p18
  $region19: #{encoder_forward.9} parent=0 // pred_check_branch
    %21 = sbr.rel (%p19) target = $region21
  $region20: #{encoder_forward.9} parent=0 // pred_region
    %vm22 = vcmask 516096
    %23 = vst.msk [vmem:[#allocation3] sm:$0x1] %vm22, 0.0
  $region21: #{encoder_forward.9} parent=0 // pred_fallthru
    _
  %v24 = vld [vmem:[%s0] sm:$0xf]
  %v25 = vld [vmem:[%s0 + $0x4] sm:$0xf]
  %v26 = vld [vmem:[%s0 + $0x8] sm:$0xf]
  %v27 = vld [vmem:[%s0 + $0xc] sm:$0xf]
  %v28 = vld [vmem:[%s0 + $0x10] sm:$0xf]
  %v29 = vld [vmem:[%s0 + $0x14] sm:$0xf]
  %v30 = vld [vmem:[%s0 + $0x18] sm:$0xf]
  %v31 = vld [vmem:[%s0 + $0x1c] sm:$0xf]
  %v32 = vld [vmem:[%s0 + $0x20] sm:$0xf]
  %v33 = vld [vmem:[%s1] sm:$0xf]
  %v34 = vld [vmem:[%s1 + $0x4] sm:$0xf]
  %v35 = vld [vmem:[%s1 + $0x8] sm:$0xf]
  %v36 = vld [vmem:[%s1 + $0xc] sm:$0xf]
  %v37 = vld [vmem:[%s1 + $0x10] sm:$0xf]
  %v38 = vld [vmem:[%s1 + $0x14] sm:$0xf]
  %v39 = vld [vmem:[%s1 + $0x18] sm:$0xf]
  %v40 = vld [vmem:[%s1 + $0x1c] sm:$0xf]
  %v41 = vld [vmem:[%s1 + $0x20] sm:$0xf]
  %v42 = vld [vmem:[%s1 + $0x24] sm:$0xf]
  %v43 = vld [vmem:[%s1 + $0x28] sm:$0xf]
  %v44 = vld [vmem:[%s1 + $0x2c] sm:$0xf]
  %v45 = vld [vmem:[%s1 + $0x30] sm:$0xf]
  %v46 = vld [vmem:[%s1 + $0x34] sm:$0xf]
  %v47 = vld [vmem:[%s1 + $0x38] sm:$0xf]
  %v48 = vld [vmem:[%s1 + $0x3c] sm:$0xf]
  %v58 = vunpack.c.l.b16 %v24
  %v59 = vunpack.c.l.b16 %v25
  %v60 = vunpack.c.l.b16 %v26
  %v61 = vunpack.c.l.b16 %v27
  %v62 = vunpack.c.l.b16 %v28
  %v63 = vunpack.c.l.b16 %v29
  %v64 = vunpack.c.l.b16 %v30
  %v65 = vunpack.c.l.b16 %v31
  %v66 = vunpack.c.l.b16 %v32
  %v67 = vpack.c.b16 %v59, %v58
  %v68 = vpack.c.b16 %v61, %v60
  %v69 = vpack.c.b16 %v63, %v62
  %v70 = vpack.c.b16 %v65, %v64
  %v71 = vpack.c.b16 %v66, %v66
  %v93 = vunpack.c.l.b16 %v33
  %v94 = vunpack.c.l.b16 %v34
  %v95 = vunpack.c.l.b16 %v35
  %v96 = vunpack.c.l.b16 %v36
  %v97 = vunpack.c.l.b16 %v37
  %v98 = vunpack.c.l.b16 %v38
  %v99 = vunpack.c.l.b16 %v39
  %v100 = vunpack.c.l.b16 %v40
  %v101 = vunpack.c.l.b16 %v41
  %v102 = vunpack.c.l.b16 %v42
  %v103 = vunpack.c.l.b16 %v43
  %v104 = vunpack.c.l.b16 %v44
  %v105 = vunpack.c.l.b16 %v45
  %v106 = vunpack.c.l.b16 %v46
  %v107 = vunpack.c.l.b16 %v47
  %v108 = vunpack.c.l.b16 %v48
  %v109 = vpack.c.b16 %v94, %v93
  %v110 = vpack.c.b16 %v96, %v95
  %v111 = vpack.c.b16 %v98, %v97
  %v112 = vpack.c.b16 %v100, %v99
  %v113 = vpack.c.b16 %v102, %v101
  %v114 = vpack.c.b16 %v104, %v103
  %v115 = vpack.c.b16 %v106, %v105
  %v116 = vpack.c.b16 %v108, %v107
  %125 = vmatprep.subr.bf16.mxu0 0
  %126 = vmatpush1.bf16.msra.mxu0 %v109
  %127 = vmatprep.subr.bf16.mxu0 0
  %128 = vmatpush1.bf16.msra.mxu0 %v110
  %129 = vmatprep.subr.bf16.mxu0 0
  %130 = vmatpush1.bf16.msra.mxu0 %v111
  %131 = vmatprep.subr.bf16.mxu0 0
  %132 = vmatpush1.bf16.msra.mxu0 %v112
  %133 = vmatprep.subr.bf16.mxu0 0
  %134 = vmatpush1.bf16.msra.mxu0 %v113
  %135 = vmatprep.subr.bf16.mxu0 0
  %136 = vmatpush1.bf16.msra.mxu0 %v114
  %137 = vmatprep.subr.bf16.mxu0 0
  %138 = vmatpush1.bf16.msra.mxu0 %v115
  %139 = vmatprep.subr.bf16.mxu0 0
  %140 = vmatpush1.bf16.msra.mxu0 %v116
  %141 = vmatprep.subr.bf16.mxu0 0
  %142 = vmatpush1.bf16.msra.mxu0 0
  %143 = vmatprep.subr.bf16.mxu0 0
  %144 = vmatpush1.bf16.msra.mxu0 0
  %145 = vmatprep.subr.bf16.mxu0 0
  %146 = vmatpush1.bf16.msra.mxu0 0
  %147 = vmatprep.subr.bf16.mxu0 0
  %148 = vmatpush1.bf16.msra.mxu0 0
  %149 = vmatprep.subr.bf16.mxu0 0
  %150 = vmatpush1.bf16.msra.mxu0 0
  %151 = vmatprep.subr.bf16.mxu0 0
  %152 = vmatpush1.bf16.msra.mxu0 0
  %153 = vmatprep.subr.bf16.mxu0 0
  %154 = vmatpush1.bf16.msra.mxu0 0
  %155 = vmatprep.subr.bf16.mxu0 0
  %156 = vmatpush1.bf16.msra.mxu0 0
  %157 = vmatprep.mubr.bf16.mxu0 0
  %158 = vmatmul.mubr.bf16.gmra.mrb[0].mxu0 %v67
  %v159 = vpop.f32.mrb[0].mxu0
  %v160 = vadd.f32 0.0, %v159
  %v161 = vpop.f32.mrb[0].mxu0
  %v162 = vpop.f32.mrb[0].mxu0
  %v163 = vadd.f32 0.0, %v162
  %v164 = vpop.f32.mrb[0].mxu0
  %165 = vmatprep.mubr.bf16.mxu0 0
  %166 = vmatmul.mubr.bf16.gmra.mrb[0].mxu0 %v68
  %v167 = vpop.f32.mrb[0].mxu0
  %v168 = vadd.f32 0.0, %v167
  %v169 = vpop.f32.mrb[0].mxu0
  %v170 = vpop.f32.mrb[0].mxu0
  %v171 = vadd.f32 0.0, %v170
  %v172 = vpop.f32.mrb[0].mxu0
  %173 = vmatprep.mubr.bf16.mxu0 0
  %174 = vmatmul.mubr.bf16.gmra.mrb[0].mxu0 %v69
  %v175 = vpop.f32.mrb[0].mxu0
  %v176 = vadd.f32 0.0, %v175
  %v177 = vpop.f32.mrb[0].mxu0
  %v178 = vpop.f32.mrb[0].mxu0
  %v179 = vadd.f32 0.0, %v178
  %v180 = vpop.f32.mrb[0].mxu0
  %181 = vmatprep.mubr.bf16.mxu0 0
  %182 = vmatmul.mubr.bf16.gmra.mrb[0].mxu0 %v70
  %v183 = vpop.f32.mrb[0].mxu0
  %v184 = vadd.f32 0.0, %v183
  %v185 = vpop.f32.mrb[0].mxu0
  %v186 = vpop.f32.mrb[0].mxu0
  %v187 = vadd.f32 0.0, %v186
  %v188 = vpop.f32.mrb[0].mxu0
  %189 = vmatprep.mubr.bf16.mxu0 0
  %190 = vmatmul.mubr.bf16.gmra.mrb[0].mxu0 %v71
  %v191 = vpop.f32.mrb[0].mxu0
  %v192 = vadd.f32 0.0, %v191
  %v193 = vpop.f32.mrb[0].mxu0
  %v194 = vpop.f32.mrb[0].mxu0
  %v195 = vpop.f32.mrb[0].mxu0
  %196 = vdwg.mxu0
  %vm197 = vcmask 523264
  %198 = vst.msk [vmem:[#allocation2] sm:$0xff] %vm197, %v160
  %199 = vst.msk [vmem:[#allocation2 + $0x8] sm:$0xff] %vm197, %v163
  %200 = vst.msk [vmem:[#allocation2 + $0x10] sm:$0xff] %vm197, %v168
  %201 = vst.msk [vmem:[#allocation2 + $0x18] sm:$0xff] %vm197, %v171
  %202 = vst.msk [vmem:[#allocation2 + $0x20] sm:$0xff] %vm197, %v176
  %203 = vst.msk [vmem:[#allocation2 + $0x28] sm:$0xff] %vm197, %v179
  %204 = vst.msk [vmem:[#allocation2 + $0x30] sm:$0xff] %vm197, %v184
  %205 = vst.msk [vmem:[#allocation2 + $0x38] sm:$0xff] %vm197, %v187
  %206 = vst.msk [vmem:[#allocation2 + $0x40] sm:$0xff] %vm197, %v192
  %v207 = vld [vmem:[#allocation3] sm:$0x1]
  %v208 = vsel %vm197, %v160, 0.0
  %v209 = vsel %vm197, %v163, 0.0
  %v210 = vadd.f32 %v208, %v209
  %v211 = vsel %vm197, %v168, 0.0
  %v212 = vadd.f32 %v210, %v211
  %v213 = vsel %vm197, %v171, 0.0
  %v214 = vadd.f32 %v212, %v213
  %v215 = vsel %vm197, %v176, 0.0
  %v216 = vadd.f32 %v214, %v215
  %v217 = vsel %vm197, %v179, 0.0
  %v218 = vadd.f32 %v216, %v217
  %v219 = vsel %vm197, %v184, 0.0
  %v220 = vadd.f32 %v218, %v219
  %v221 = vsel %vm197, %v187, 0.0
  %v222 = vadd.f32 %v220, %v221
  %v223 = vsel %vm197, %v192, 0.0
  %v224 = vadd.f32 %v222, %v223
  %v225 = vrot.slane %v224, 4
  %v226 = vadd.f32 %v224, %v225
  %v227 = vrot.slane %v226, 2
  %v228 = vadd.f32 %v226, %v227
  %v229 = vrot.slane %v228, 1
  %v230 = vadd.f32 %v228, %v229
  %v231 = vadd.f32 %v207, %v230
  %vm232 = vcmask 516096
  %233 = vst.msk [vmem:[#allocation3] sm:$0x1] %vm232, %v231
  // Predicated region
  $region22: #{encoder_forward.9} parent=0 // pred_check
    %p234 = pneg %p18
  $region23: #{encoder_forward.9} parent=0 // pred_check_branch
    %236 = sbr.rel (%p234) target = $region25
  $region24: #{encoder_forward.9} parent=0 // pred_region
    %v237 = vld [vmem:[#allocation3] sm:$0x1]
    %v238 = vmul.f32 %v237, 0.013888889
    %v239 = vld [vmem:[#allocation2] sm:$0xff]
    %v240 = vld [vmem:[#allocation2 + $0x8] sm:$0xff]
    %v241 = vld [vmem:[#allocation2 + $0x10] sm:$0xff]
    %v242 = vld [vmem:[#allocation2 + $0x18] sm:$0xff]
    %v243 = vld [vmem:[#allocation2 + $0x20] sm:$0xff]
    %v244 = vld [vmem:[#allocation2 + $0x28] sm:$0xff]
    %v245 = vld [vmem:[#allocation2 + $0x30] sm:$0xff]
    %v246 = vld [vmem:[#allocation2 + $0x38] sm:$0xff]
    %v247 = vld [vmem:[#allocation2 + $0x40] sm:$0xff]
    %v249 = vlaneseq
    %v250 = vshrl.u32 %v249, 7
    %v251 = vsub.s32 0, %v250
    %v252 = vrot.slane %v238, %v251
    %v254 = vsub.f32 %v239, %v252
    %v255 = vsub.f32 %v240, %v252
    %v256 = vsub.f32 %v241, %v252
    %v257 = vsub.f32 %v242, %v252
    %v258 = vsub.f32 %v243, %v252
    %v259 = vsub.f32 %v244, %v252
    %v260 = vsub.f32 %v245, %v252
    %v261 = vsub.f32 %v246, %v252
    %v262 = vsub.f32 %v247, %v252
    %v263 = vmul.f32 %v254, %v254
    %v264 = vmul.f32 %v255, %v255
    %v265 = vmul.f32 %v256, %v256
    %v266 = vmul.f32 %v257, %v257
    %v267 = vmul.f32 %v258, %v258
    %v268 = vmul.f32 %v259, %v259
    %v269 = vmul.f32 %v260, %v260
    %v270 = vmul.f32 %v261, %v261
    %v271 = vmul.f32 %v262, %v262
    %v272 = vsel %vm197, %v263, 0.0
    %v273 = vsel %vm197, %v264, 0.0
    %v274 = vadd.f32 %v272, %v273
    %v275 = vsel %vm197, %v265, 0.0
    %v276 = vadd.f32 %v274, %v275
    %v277 = vsel %vm197, %v266, 0.0
    %v278 = vadd.f32 %v276, %v277
    %v279 = vsel %vm197, %v267, 0.0
    %v280 = vadd.f32 %v278, %v279
    %v281 = vsel %vm197, %v268, 0.0
    %v282 = vadd.f32 %v280, %v281
    %v283 = vsel %vm197, %v269, 0.0
    %v284 = vadd.f32 %v282, %v283
    %v285 = vsel %vm197, %v270, 0.0
    %v286 = vadd.f32 %v284, %v285
    %v287 = vsel %vm197, %v271, 0.0
    %v288 = vadd.f32 %v286, %v287
    %v289 = vrot.slane %v288, 4
    %v290 = vadd.f32 %v288, %v289
    %v291 = vrot.slane %v290, 2
    %v292 = vadd.f32 %v290, %v291
    %v293 = vrot.slane %v292, 1
    %v294 = vadd.f32 %v292, %v293
    %v295 = vmul.f32 %v238, %v238
    %v296 = vmul.f32 %v295, 0.0
    %v297 = vsub.f32 %v294, %v296
    %v298 = vmul.f32 %v297, 0.013888889
    %v299 = vmax.f32 %v298, 0.0
    %v300 = vadd.f32 %v299, 1e-05
    %v301 = vrsqrt.pop %v300
    %v302 = vld [vmem:[%s2] sm:$0x1]
    %v303 = vmul.f32 %v302, %v301
    %v304 = vld [vmem:[%s3] sm:$0x1]
    %v305 = vmul.f32 %v238, %v303
    %v306 = vsub.f32 %v304, %v305
    %v308 = vlaneseq
    %v309 = vshrl.u32 %v308, 7
    %v310 = vsub.s32 0, %v309
    %v311 = vrot.slane %v303, %v310
    %v313 = vmul.f32 %v239, %v311
    %v314 = vmul.f32 %v240, %v311
    %v315 = vmul.f32 %v241, %v311
    %v316 = vmul.f32 %v242, %v311
    %v317 = vmul.f32 %v243, %v311
    %v318 = vmul.f32 %v244, %v311
    %v319 = vmul.f32 %v245, %v311
    %v320 = vmul.f32 %v246, %v311
    %v321 = vmul.f32 %v247, %v311
    %v323 = vlaneseq
    %v324 = vshrl.u32 %v323, 7
    %v325 = vsub.s32 0, %v324
    %v326 = vrot.slane %v306, %v325
    %v328 = vadd.f32 %v313, %v326
    %v329 = vadd.f32 %v314, %v326
    %v330 = vadd.f32 %v315, %v326
    %v331 = vadd.f32 %v316, %v326
    %v332 = vadd.f32 %v317, %v326
    %v333 = vadd.f32 %v318, %v326
    %v334 = vadd.f32 %v319, %v326
    %v335 = vadd.f32 %v320, %v326
    %v336 = vadd.f32 %v321, %v326
    %337 = vst.msk [vmem:[%s4] sm:$0xff] %vm197, %v328
    %338 = vst.msk [vmem:[%s4 + $0x8] sm:$0xff] %vm197, %v329
    %339 = vst.msk [vmem:[%s4 + $0x10] sm:$0xff] %vm197, %v330
    %340 = vst.msk [vmem:[%s4 + $0x18] sm:$0xff] %vm197, %v331
    %341 = vst.msk [vmem:[%s4 + $0x20] sm:$0xff] %vm197, %v332
    %342 = vst.msk [vmem:[%s4 + $0x28] sm:$0xff] %vm197, %v333
    %343 = vst.msk [vmem:[%s4 + $0x30] sm:$0xff] %vm197, %v334
    %344 = vst.msk [vmem:[%s4 + $0x38] sm:$0xff] %vm197, %v335
    %345 = vst.msk [vmem:[%s4 + $0x40] sm:$0xff] %vm197, %v336
  $region25: #{encoder_forward.9} parent=0 // pred_fallthru
    _
  // Predicated region
  $region26: #{encoder_forward.9} parent=0 // pred_check
    _
  $region27: #{encoder_forward.9} parent=0 // pred_check_branch
    %347 = sbr.rel (0) target = $region29
  $region28: #{encoder_forward.9} parent=0 // pred_region
    _
  $region29: #{encoder_forward.9} parent=0 // pred_fallthru
    _
  // Predicated region
  $region30: #{encoder_forward.9} parent=0 // pred_check
    _
  $region31: #{encoder_forward.9} parent=0 // pred_check_branch
    %349 = sbr.rel (0) target = $region33
  $region32: #{encoder_forward.9} parent=0 // pred_region
    _
  $region33: #{encoder_forward.9} parent=0 // pred_fallthru
    _

</llo_original>
